<compile_context>
chip_gen: v5e
topology: v5e:2x2
jax: 0.10.0
libtpu: 0.0.40
codegen_flags: <defaults>
</compile_context>

<pallas_src>
import functools

import jax
import jax.numpy as jnp
from jax import lax
from jax.experimental import pallas as pl
from jax.experimental.pallas import tpu as pltpu

HIDDEN = 16
LANE = 128                       # TPU lane width; all four gates share one block
GOFF_I, GOFF_F, GOFF_O, GOFF_G = 0, 32, 64, 96   # lane offsets of i, f, o, g


def _round_up(v, m):
    return ((v + m - 1) // m) * m


# ---------------------------------------------------------------------------
# Kernel
# ---------------------------------------------------------------------------
def _lstm_fc_softmax_kernel(
    x_ref,      # (T*TB, Fp)   time-major flattened input for this batch tile
    wih0_ref,   # (Fp, 128)    layer-0 input weights, gate-packed
    whh0_ref,   # (16, 128)    layer-0 recurrent weights, gate-packed
    b0_ref,     # (1, 128)     layer-0 combined bias (b_ih + b_hh)
    wih1_ref,   # (16, 128)    layer-1 input weights, gate-packed
    whh1_ref,   # (16, 128)    layer-1 recurrent weights, gate-packed
    b1_ref,     # (1, 128)     layer-1 combined bias
    wfc_ref,    # (16, 128)    fc weights (cols >= output_size are zero)
    bfc_ref,    # (1, 128)     fc bias (-1e30 in padded columns)
    out_ref,    # (TB, 128)    softmax(fc(h_last)); padded columns == 0
    xproj_ref,  # (T*TB, 128)  scratch: hoisted layer-0 input projection
):
    H = HIDDEN
    TBT = x_ref.shape[0]
    TB = out_ref.shape[0]
    T = TBT // TB

    # Hoisted layer-0 input projection (+ bias): one big MXU matmul instead of
    # T tiny ones inside the serial recurrence.  No reshapes needed.
    xproj_ref[...] = (
        jnp.dot(x_ref[...], wih0_ref[...], preferred_element_type=jnp.float32)
        + b0_ref[...]
    )

    whh0 = whh0_ref[...]
    wih1 = wih1_ref[...]
    whh1 = whh1_ref[...]
    b1 = b1_ref[...]

    def gates_to_hc(gates, c):
        # Single 128-lane gate block: one sigmoid slab covers i, f, o; one
        # tanh vreg for g.  Gate extraction is a static 16-lane slice.
        sig = jax.nn.sigmoid(gates)                       # (TB, 128)
        i_g = sig[:, GOFF_I:GOFF_I + H]
        f_g = sig[:, GOFF_F:GOFF_F + H]
        o_g = sig[:, GOFF_O:GOFF_O + H]
        g_g = jnp.tanh(gates[:, GOFF_G:GOFF_G + H])
        c_new = f_g * c + i_g * g_g
        h_new = o_g * jnp.tanh(c_new)
        return h_new, c_new

    def step(t, carry):
        h0, c0, h1, c1 = carry
        row = pl.multiple_of(t * TB, TB)
        # Layer 0: only the recurrent matmul remains on the serial path.
        g0 = xproj_ref[pl.ds(row, TB), :] + jnp.dot(
            h0, whh0, preferred_element_type=jnp.float32)
        h0n, c0n = gates_to_hc(g0, c0)
        # Layer 1: two dots; the h1(t-1) term is independent of h0(t), so the
        # scheduler can overlap it with layer-0 work.
        g1 = (
            jnp.dot(h0n, wih1, preferred_element_type=jnp.float32)
            + jnp.dot(h1, whh1, preferred_element_type=jnp.float32)
            + b1
        )
        h1n, c1n = gates_to_hc(g1, c1)
        return (h0n, c0n, h1n, c1n)

    zeros = jnp.zeros((TB, H), jnp.float32)
    unroll = True if T <= 32 else 8   # full unroll only for short sequences
    _, _, h1_last, _ = lax.fori_loop(
        0, T, step, (zeros, zeros, zeros, zeros), unroll=unroll)

    # fc on the last top-layer hidden state, then softmax.  Padded logit
    # columns carry a -1e30 bias so exp(.) underflows to exactly 0 there.
    logits = (
        jnp.dot(h1_last, wfc_ref[...], preferred_element_type=jnp.float32)
        + bfc_ref[...]
    )
    m = jnp.max(logits, axis=-1, keepdims=True)
    e = jnp.exp(logits - m)
    out_ref[...] = e / jnp.sum(e, axis=-1, keepdims=True)   # exact, epilogue-only


# ---------------------------------------------------------------------------
# One-time parameter packing (hoisted out of the per-call forward)
# ---------------------------------------------------------------------------
def pack_params(params):
    """Repack PyTorch-layout LSTM/Linear params into the kernel's lane-packed,
    right-multiply layout.  Call once; pass the result to context_lstm_forward."""
    H = HIDDEN
    # PyTorch gate order along the 4H axis is (i, f, g, o); kernel lane
    # offsets are (i, f, o, g) at 0/32/64/96.
    order = ((GOFF_I, 0), (GOFF_F, 1), (GOFF_O, 3), (GOFF_G, 2))

    def pack_matrix(w, rows_pad):
        w_t = jnp.asarray(w, jnp.float32).T              # (K, 4H)
        K = w_t.shape[0]
        out = jnp.zeros((rows_pad, LANE), jnp.float32)
        for off, idx in order:
            out = out.at[:K, off:off + H].set(w_t[:, idx * H:(idx + 1) * H])
        return out

    def pack_bias(b):
        b = jnp.asarray(b, jnp.float32)
        out = jnp.zeros((1, LANE), jnp.float32)
        for off, idx in order:
            out = out.at[0, off:off + H].set(b[idx * H:(idx + 1) * H])
        return out

    input_size = params["w_ih_l0"].shape[1]
    output_size = params["w_fc"].shape[0]
    F_pad = max(8, _round_up(input_size, 8))

    wfc = jnp.zeros((H, LANE), jnp.float32).at[:, :output_size].set(
        jnp.asarray(params["w_fc"], jnp.float32).T)
    bfc = jnp.full((1, LANE), -1e30, jnp.float32).at[0, :output_size].set(
        jnp.asarray(params["b_fc"], jnp.float32))

    return {
        "w_ih_l0": pack_matrix(params["w_ih_l0"], F_pad),
        "w_hh_l0": pack_matrix(params["w_hh_l0"], H),
        "b_l0": pack_bias(params["b_ih_l0"] + params["b_hh_l0"]),
        "w_ih_l1": pack_matrix(params["w_ih_l1"], H),
        "w_hh_l1": pack_matrix(params["w_hh_l1"], H),
        "b_l1": pack_bias(params["b_ih_l1"] + params["b_hh_l1"]),
        "w_fc": wfc,
        "b_fc": bfc,
    }


# ---------------------------------------------------------------------------
# Forward wrapper
# ---------------------------------------------------------------------------
@functools.partial(jax.jit, static_argnames=("output_size", "batch_tiles"))
def context_lstm_forward(x, packed, output_size, batch_tiles=1):
    """x: (B, T, F) float32, packed: output of pack_params -> (B, output_size)."""
    B, T, F = x.shape
    F_pad = packed["w_ih_l0"].shape[0]

    # Batch tiling: one tile by default.  On v7x with B_pad >= 16, pass
    # batch_tiles=2 so the "parallel" grid axis splits the independent
    # per-batch recurrences across the two TensorCores.
    nt = max(1, batch_tiles)
    TB = max(8, _round_up((B + nt - 1) // nt, 8))
    B_pad = TB * nt

    # Time-major, zero-padded, pre-flattened input: (tiles, T*TB, F_pad) with
    # row r = t*TB + j inside each tile (no reshapes inside the kernel).
    x_t = jnp.transpose(x, (1, 0, 2)).astype(jnp.float32)           # (T, B, F)
    x_p = jnp.zeros((T, B_pad, F_pad), jnp.float32).at[:, :B, :F].set(x_t)
    x_flat = (
        x_p.reshape(T, nt, TB, F_pad)
        .transpose(1, 0, 2, 3)
        .reshape(nt, T * TB, F_pad)
    )

    # VMEM budget: weights + xproj scratch + double-buffered x/out blocks,
    # plus generous headroom (documents how much room is left for bigger TB/T).
    lane_b = 4 * LANE
    need = (
        2 * T * TB * F_pad * 4                       # x block (double-buffered)
        + T * TB * lane_b                            # xproj scratch
        + 2 * TB * lane_b                            # out block (double-buffered)
        + (F_pad + 4 * HIDDEN + 3 * 8) * lane_b      # weights + padded biases
    )
    vmem_limit = int(min(64 * 1024 * 1024, need + 8 * 1024 * 1024))

    out = pl.pallas_call(
        _lstm_fc_softmax_kernel,
        out_shape=jax.ShapeDtypeStruct((B_pad, LANE), jnp.float32),
        grid_spec=pltpu.PrefetchScalarGridSpec(
            num_scalar_prefetch=0,
            grid=(nt,),
            in_specs=[
                pl.BlockSpec((None, T * TB, F_pad), lambda b: (b, 0, 0)),  # x
                pl.BlockSpec((F_pad, LANE), lambda b: (0, 0)),             # W_ih0
                pl.BlockSpec((HIDDEN, LANE), lambda b: (0, 0)),            # W_hh0
                pl.BlockSpec((1, LANE), lambda b: (0, 0)),                 # b0
                pl.BlockSpec((HIDDEN, LANE), lambda b: (0, 0)),            # W_ih1
                pl.BlockSpec((HIDDEN, LANE), lambda b: (0, 0)),            # W_hh1
                pl.BlockSpec((1, LANE), lambda b: (0, 0)),                 # b1
                pl.BlockSpec((HIDDEN, LANE), lambda b: (0, 0)),            # W_fc
                pl.BlockSpec((1, LANE), lambda b: (0, 0)),                 # b_fc
            ],
            out_specs=pl.BlockSpec((TB, LANE), lambda b: (b, 0)),
            scratch_shapes=[pltpu.VMEM((T * TB, LANE), jnp.float32)],
        ),
        compiler_params=pltpu.CompilerParams(
            dimension_semantics=("parallel",),
            vmem_limit_bytes=vmem_limit,
        ),
    )(
        x_flat,
        packed["w_ih_l0"], packed["w_hh_l0"], packed["b_l0"],
        packed["w_ih_l1"], packed["w_hh_l1"], packed["b_l1"],
        packed["w_fc"], packed["b_fc"],
    )
    return out[:B, :output_size]


# ---------------------------------------------------------------------------
# Synthetic params + pure-JAX reference (PyTorch semantics)
# ---------------------------------------------------------------------------
def init_params(key, input_size, output_size):
    H = HIDDEN
    ks = jax.random.split(key, 12)
    k = 1.0 / jnp.sqrt(jnp.float32(H))

    def u(key, shape):
        return jax.random.uniform(key, shape, jnp.float32, -k, k)

    return {
        "w_ih_l0": u(ks[0], (4 * H, input_size)),
        "w_hh_l0": u(ks[1], (4 * H, H)),
        "b_ih_l0": u(ks[2], (4 * H,)),
        "b_hh_l0": u(ks[3], (4 * H,)),
        "w_ih_l1": u(ks[4], (4 * H, H)),
        "w_hh_l1": u(ks[5], (4 * H, H)),
        "b_ih_l1": u(ks[6], (4 * H,)),
        "b_hh_l1": u(ks[7], (4 * H,)),
        "w_fc": u(ks[8], (output_size, H)),
        "b_fc": u(ks[9], (output_size,)),
    }


def reference_forward(x, params, output_size):
    H = HIDDEN
    B, T, F = x.shape

    def cell(x_t, h, c, w_ih, w_hh, b_ih, b_hh):
        g = x_t @ w_ih.T + b_ih + h @ w_hh.T + b_hh
        i = jax.nn.sigmoid(g[:, 0 * H:1 * H])
        f = jax.nn.sigmoid(g[:, 1 * H:2 * H])
        gg = jnp.tanh(g[:, 2 * H:3 * H])
        o = jax.nn.sigmoid(g[:, 3 * H:4 * H])
        c = f * c + i * gg
        h = o * jnp.tanh(c)
        return h, c

    h0 = c0 = h1 = c1 = jnp.zeros((B, H), jnp.float32)
    for t in range(T):
        h0, c0 = cell(x[:, t, :], h0, c0, params["w_ih_l0"],
                      params["w_hh_l0"], params["b_ih_l0"], params["b_hh_l0"])
        h1, c1 = cell(h0, h1, c1, params["w_ih_l1"],
                      params["w_hh_l1"], params["b_ih_l1"], params["b_hh_l1"])
    logits = h1 @ params["w_fc"].T + params["b_fc"]
    return jax.nn.softmax(logits, axis=-1)


if __name__ == "__main__":
    B, T, INPUT_SIZE, OUTPUT_SIZE = 2, 8, 4, 4

    key = jax.random.PRNGKey(0)
    kx, kp = jax.random.split(key)
    x = jax.random.normal(kx, (B, T, INPUT_SIZE), jnp.float32)
    params = init_params(kp, INPUT_SIZE, OUTPUT_SIZE)

    packed = pack_params(params)   # one-time packing, off the per-call path

    out = context_lstm_forward(x, packed, OUTPUT_SIZE)
    out = jax.block_until_ready(out)

    ref = reference_forward(x, params, OUTPUT_SIZE)
    assert out.shape == (B, OUTPUT_SIZE)
    # Tolerance covers default MXU precision (bf16 passes) over the recurrence.
    assert jnp.allclose(out, ref, atol=5e-3, rtol=5e-3), (out, ref)
    # Exact softmax normalization now -> tight sum-to-1 check.
    assert jnp.allclose(jnp.sum(out, axis=-1), 1.0, atol=1e-4)

    print("KERNEL_OK")
</pallas_src>

<mosaic_0001>
module attributes {stable_mosaic.version = 11 : i64} {
  func.func @_lstm_fc_softmax_kernel(%arg0: i32, %arg1: memref<1x64x8xf32, #tpu.memory_space<vmem>>, %arg2: memref<8x128xf32, #tpu.memory_space<vmem>>, %arg3: memref<16x128xf32, #tpu.memory_space<vmem>>, %arg4: memref<1x128xf32, #tpu.memory_space<vmem>>, %arg5: memref<16x128xf32, #tpu.memory_space<vmem>>, %arg6: memref<16x128xf32, #tpu.memory_space<vmem>>, %arg7: memref<1x128xf32, #tpu.memory_space<vmem>>, %arg8: memref<16x128xf32, #tpu.memory_space<vmem>>, %arg9: memref<1x128xf32, #tpu.memory_space<vmem>>, %arg10: memref<8x128xf32, #tpu.memory_space<vmem>>, %arg11: memref<64x128xf32, #tpu.memory_space<vmem>>) attributes {dimension_semantics = [#tpu.dimension_semantics<parallel>], iteration_bounds = array<i64: 1>, scalar_prefetch = 0 : i64, scratch_operands = 1 : i64, tpu.core_type = #tpu.core_type<tc>, window_params = [{transform_indices = @transform_0, window_bounds = array<i64: 1, 64, 8>}, {pipeline_mode = #tpu.pipeline_mode<synchronous>, transform_indices = @transform_1, window_bounds = array<i64: 8, 128>}, {pipeline_mode = #tpu.pipeline_mode<synchronous>, transform_indices = @transform_2, window_bounds = array<i64: 16, 128>}, {pipeline_mode = #tpu.pipeline_mode<synchronous>, transform_indices = @transform_3, window_bounds = array<i64: 1, 128>}, {pipeline_mode = #tpu.pipeline_mode<synchronous>, transform_indices = @transform_4, window_bounds = array<i64: 16, 128>}, {pipeline_mode = #tpu.pipeline_mode<synchronous>, transform_indices = @transform_5, window_bounds = array<i64: 16, 128>}, {pipeline_mode = #tpu.pipeline_mode<synchronous>, transform_indices = @transform_6, window_bounds = array<i64: 1, 128>}, {pipeline_mode = #tpu.pipeline_mode<synchronous>, transform_indices = @transform_7, window_bounds = array<i64: 16, 128>}, {pipeline_mode = #tpu.pipeline_mode<synchronous>, transform_indices = @transform_8, window_bounds = array<i64: 1, 128>}, {transform_indices = @transform_9, window_bounds = array<i64: 8, 128>}]} {
    %c0 = arith.constant 0 : index
    %c0_0 = arith.constant 0 : index
    %c0_1 = arith.constant 0 : index
    %0 = vector.load %arg1[%c0, %c0_0, %c0_1] : memref<1x64x8xf32, #tpu.memory_space<vmem>>, vector<1x64x8xf32>
    %1 = vector.shape_cast %0 : vector<1x64x8xf32> to vector<64x8xf32>
    %c0_2 = arith.constant 0 : index
    %c0_3 = arith.constant 0 : index
    %2 = vector.load %arg2[%c0_2, %c0_3] : memref<8x128xf32, #tpu.memory_space<vmem>>, vector<8x128xf32>
    %cst = arith.constant dense<0.000000e+00> : vector<64x128xf32>
    %3 = tpu.matmul %1, %2, %cst {dimension_numbers = #tpu.dot_dimension_numbers<[1], [0], [0], [1], [0, 0, 1, 1], [], []>} : vector<64x8xf32>, vector<8x128xf32>, vector<64x128xf32> -> vector<64x128xf32>
    %c0_4 = arith.constant 0 : index
    %c0_5 = arith.constant 0 : index
    %4 = vector.load %arg4[%c0_4, %c0_5] : memref<1x128xf32, #tpu.memory_space<vmem>>, vector<1x128xf32>
    %5 = vector.broadcast %4 : vector<1x128xf32> to vector<64x128xf32>
    %6 = arith.addf %3, %5 : vector<64x128xf32>
    %c0_6 = arith.constant 0 : index
    %c0_7 = arith.constant 0 : index
    %7 = vector.load %arg11[%c0_6, %c0_7] : memref<64x128xf32, #tpu.memory_space<vmem>>, vector<64x128xf32>
    tpu.vector_store %arg11[%c0_6, %c0_7], %6 {strides = array<i32>} : memref<64x128xf32, #tpu.memory_space<vmem>>, vector<64x128xf32>,
    %c0_8 = arith.constant 0 : index
    %c0_9 = arith.constant 0 : index
    %8 = vector.load %arg3[%c0_8, %c0_9] : memref<16x128xf32, #tpu.memory_space<vmem>>, vector<16x128xf32>
    %c0_10 = arith.constant 0 : index
    %c0_11 = arith.constant 0 : index
    %9 = vector.load %arg5[%c0_10, %c0_11] : memref<16x128xf32, #tpu.memory_space<vmem>>, vector<16x128xf32>
    %c0_12 = arith.constant 0 : index
    %c0_13 = arith.constant 0 : index
    %10 = vector.load %arg6[%c0_12, %c0_13] : memref<16x128xf32, #tpu.memory_space<vmem>>, vector<16x128xf32>
    %c0_14 = arith.constant 0 : index
    %c0_15 = arith.constant 0 : index
    %11 = vector.load %arg7[%c0_14, %c0_15] : memref<1x128xf32, #tpu.memory_space<vmem>>, vector<1x128xf32>
    %cst_16 = arith.constant 0.000000e+00 : f32
    %12 = vector.broadcast %cst_16 : f32 to vector<8x16xf32>
    %c0_i32 = arith.constant 0 : i32
    %c8_i32 = arith.constant 8 : i32
    %13 = arith.muli %c0_i32, %c8_i32 : i32
    %14 = tpu.assume_multiple %13, 8 : i32
    %15 = arith.index_cast %14 : i32 to index
    %c0_17 = arith.constant 0 : index
    %16 = vector.load %arg11[%15, %c0_17] : memref<64x128xf32, #tpu.memory_space<vmem>>, vector<8x128xf32>
    %cst_18 = arith.constant dense<0.000000e+00> : vector<8x128xf32>
    %17 = tpu.matmul %12, %8, %cst_18 {dimension_numbers = #tpu.dot_dimension_numbers<[1], [0], [0], [1], [0, 0, 1, 1], [], []>} : vector<8x16xf32>, vector<16x128xf32>, vector<8x128xf32> -> vector<8x128xf32>
    %18 = arith.addf %16, %17 : vector<8x128xf32>
    %19 = arith.negf %18 : vector<8x128xf32>
    %20 = math.exp %19 : vector<8x128xf32>
    %cst_19 = arith.constant 1.000000e+00 : f32
    %21 = vector.broadcast %cst_19 : f32 to vector<8x128xf32>
    %22 = arith.addf %21, %20 : vector<8x128xf32>
    %23 = arith.divf %21, %22 : vector<8x128xf32>
    %24 = vector.extract_strided_slice %23 {offsets = [0, 0], sizes = [8, 16], strides = [1, 1]} : vector<8x128xf32> to vector<8x16xf32>
    %25 = vector.extract_strided_slice %23 {offsets = [0, 32], sizes = [8, 16], strides = [1, 1]} : vector<8x128xf32> to vector<8x16xf32>
    %26 = vector.extract_strided_slice %23 {offsets = [0, 64], sizes = [8, 16], strides = [1, 1]} : vector<8x128xf32> to vector<8x16xf32>
    %27 = vector.extract_strided_slice %18 {offsets = [0, 96], sizes = [8, 16], strides = [1, 1]} : vector<8x128xf32> to vector<8x16xf32>
    %28 = math.tanh %27 : vector<8x16xf32>
    %29 = arith.mulf %25, %12 : vector<8x16xf32>
    %30 = arith.mulf %24, %28 : vector<8x16xf32>
    %31 = arith.addf %29, %30 : vector<8x16xf32>
    %32 = math.tanh %31 : vector<8x16xf32>
    %33 = arith.mulf %26, %32 : vector<8x16xf32>
    %cst_20 = arith.constant dense<0.000000e+00> : vector<8x128xf32>
    %34 = tpu.matmul %33, %9, %cst_20 {dimension_numbers = #tpu.dot_dimension_numbers<[1], [0], [0], [1], [0, 0, 1, 1], [], []>} : vector<8x16xf32>, vector<16x128xf32>, vector<8x128xf32> -> vector<8x128xf32>
    %cst_21 = arith.constant dense<0.000000e+00> : vector<8x128xf32>
    %35 = tpu.matmul %12, %10, %cst_21 {dimension_numbers = #tpu.dot_dimension_numbers<[1], [0], [0], [1], [0, 0, 1, 1], [], []>} : vector<8x16xf32>, vector<16x128xf32>, vector<8x128xf32> -> vector<8x128xf32>
    %36 = arith.addf %34, %35 : vector<8x128xf32>
    %37 = vector.broadcast %11 : vector<1x128xf32> to vector<8x128xf32>
    %38 = arith.addf %36, %37 : vector<8x128xf32>
    %39 = arith.negf %38 : vector<8x128xf32>
    %40 = math.exp %39 : vector<8x128xf32>
    %cst_22 = arith.constant 1.000000e+00 : f32
    %41 = vector.broadcast %cst_22 : f32 to vector<8x128xf32>
    %42 = arith.addf %41, %40 : vector<8x128xf32>
    %43 = arith.divf %41, %42 : vector<8x128xf32>
    %44 = vector.extract_strided_slice %43 {offsets = [0, 0], sizes = [8, 16], strides = [1, 1]} : vector<8x128xf32> to vector<8x16xf32>
    %45 = vector.extract_strided_slice %43 {offsets = [0, 32], sizes = [8, 16], strides = [1, 1]} : vector<8x128xf32> to vector<8x16xf32>
    %46 = vector.extract_strided_slice %43 {offsets = [0, 64], sizes = [8, 16], strides = [1, 1]} : vector<8x128xf32> to vector<8x16xf32>
    %47 = vector.extract_strided_slice %38 {offsets = [0, 96], sizes = [8, 16], strides = [1, 1]} : vector<8x128xf32> to vector<8x16xf32>
    %48 = math.tanh %47 : vector<8x16xf32>
    %49 = arith.mulf %45, %12 : vector<8x16xf32>
    %50 = arith.mulf %44, %48 : vector<8x16xf32>
    %51 = arith.addf %49, %50 : vector<8x16xf32>
    %52 = math.tanh %51 : vector<8x16xf32>
    %53 = arith.mulf %46, %52 : vector<8x16xf32>
    %c1_i32 = arith.constant 1 : i32
    %c8_i32_23 = arith.constant 8 : i32
    %54 = arith.muli %c1_i32, %c8_i32_23 : i32
    %55 = tpu.assume_multiple %54, 8 : i32
    %56 = arith.index_cast %55 : i32 to index
    %c0_24 = arith.constant 0 : index
    %57 = vector.load %arg11[%56, %c0_24] : memref<64x128xf32, #tpu.memory_space<vmem>>, vector<8x128xf32>
    %cst_25 = arith.constant dense<0.000000e+00> : vector<8x128xf32>
    %58 = tpu.matmul %33, %8, %cst_25 {dimension_numbers = #tpu.dot_dimension_numbers<[1], [0], [0], [1], [0, 0, 1, 1], [], []>} : vector<8x16xf32>, vector<16x128xf32>, vector<8x128xf32> -> vector<8x128xf32>
    %59 = arith.addf %57, %58 : vector<8x128xf32>
    %60 = arith.negf %59 : vector<8x128xf32>
    %61 = math.exp %60 : vector<8x128xf32>
    %cst_26 = arith.constant 1.000000e+00 : f32
    %62 = vector.broadcast %cst_26 : f32 to vector<8x128xf32>
    %63 = arith.addf %62, %61 : vector<8x128xf32>
    %64 = arith.divf %62, %63 : vector<8x128xf32>
    %65 = vector.extract_strided_slice %64 {offsets = [0, 0], sizes = [8, 16], strides = [1, 1]} : vector<8x128xf32> to vector<8x16xf32>
    %66 = vector.extract_strided_slice %64 {offsets = [0, 32], sizes = [8, 16], strides = [1, 1]} : vector<8x128xf32> to vector<8x16xf32>
    %67 = vector.extract_strided_slice %64 {offsets = [0, 64], sizes = [8, 16], strides = [1, 1]} : vector<8x128xf32> to vector<8x16xf32>
    %68 = vector.extract_strided_slice %59 {offsets = [0, 96], sizes = [8, 16], strides = [1, 1]} : vector<8x128xf32> to vector<8x16xf32>
    %69 = math.tanh %68 : vector<8x16xf32>
    %70 = arith.mulf %66, %31 : vector<8x16xf32>
    %71 = arith.mulf %65, %69 : vector<8x16xf32>
    %72 = arith.addf %70, %71 : vector<8x16xf32>
    %73 = math.tanh %72 : vector<8x16xf32>
    %74 = arith.mulf %67, %73 : vector<8x16xf32>
    %cst_27 = arith.constant dense<0.000000e+00> : vector<8x128xf32>
    %75 = tpu.matmul %74, %9, %cst_27 {dimension_numbers = #tpu.dot_dimension_numbers<[1], [0], [0], [1], [0, 0, 1, 1], [], []>} : vector<8x16xf32>, vector<16x128xf32>, vector<8x128xf32> -> vector<8x128xf32>
    %cst_28 = arith.constant dense<0.000000e+00> : vector<8x128xf32>
    %76 = tpu.matmul %53, %10, %cst_28 {dimension_numbers = #tpu.dot_dimension_numbers<[1], [0], [0], [1], [0, 0, 1, 1], [], []>} : vector<8x16xf32>, vector<16x128xf32>, vector<8x128xf32> -> vector<8x128xf32>
    %77 = arith.addf %75, %76 : vector<8x128xf32>
    %78 = vector.broadcast %11 : vector<1x128xf32> to vector<8x128xf32>
    %79 = arith.addf %77, %78 : vector<8x128xf32>
    %80 = arith.negf %79 : vector<8x128xf32>
    %81 = math.exp %80 : vector<8x128xf32>
    %cst_29 = arith.constant 1.000000e+00 : f32
    %82 = vector.broadcast %cst_29 : f32 to vector<8x128xf32>
    %83 = arith.addf %82, %81 : vector<8x128xf32>
    %84 = arith.divf %82, %83 : vector<8x128xf32>
    %85 = vector.extract_strided_slice %84 {offsets = [0, 0], sizes = [8, 16], strides = [1, 1]} : vector<8x128xf32> to vector<8x16xf32>
    %86 = vector.extract_strided_slice %84 {offsets = [0, 32], sizes = [8, 16], strides = [1, 1]} : vector<8x128xf32> to vector<8x16xf32>
    %87 = vector.extract_strided_slice %84 {offsets = [0, 64], sizes = [8, 16], strides = [1, 1]} : vector<8x128xf32> to vector<8x16xf32>
    %88 = vector.extract_strided_slice %79 {offsets = [0, 96], sizes = [8, 16], strides = [1, 1]} : vector<8x128xf32> to vector<8x16xf32>
    %89 = math.tanh %88 : vector<8x16xf32>
    %90 = arith.mulf %86, %51 : vector<8x16xf32>
    %91 = arith.mulf %85, %89 : vector<8x16xf32>
    %92 = arith.addf %90, %91 : vector<8x16xf32>
    %93 = math.tanh %92 : vector<8x16xf32>
    %94 = arith.mulf %87, %93 : vector<8x16xf32>
    %c2_i32 = arith.constant 2 : i32
    %c8_i32_30 = arith.constant 8 : i32
    %95 = arith.muli %c2_i32, %c8_i32_30 : i32
    %96 = tpu.assume_multiple %95, 8 : i32
    %97 = arith.index_cast %96 : i32 to index
    %c0_31 = arith.constant 0 : index
    %98 = vector.load %arg11[%97, %c0_31] : memref<64x128xf32, #tpu.memory_space<vmem>>, vector<8x128xf32>
    %cst_32 = arith.constant dense<0.000000e+00> : vector<8x128xf32>
    %99 = tpu.matmul %74, %8, %cst_32 {dimension_numbers = #tpu.dot_dimension_numbers<[1], [0], [0], [1], [0, 0, 1, 1], [], []>} : vector<8x16xf32>, vector<16x128xf32>, vector<8x128xf32> -> vector<8x128xf32>
    %100 = arith.addf %98, %99 : vector<8x128xf32>
    %101 = arith.negf %100 : vector<8x128xf32>
    %102 = math.exp %101 : vector<8x128xf32>
    %cst_33 = arith.constant 1.000000e+00 : f32
    %103 = vector.broadcast %cst_33 : f32 to vector<8x128xf32>
    %104 = arith.addf %103, %102 : vector<8x128xf32>
    %105 = arith.divf %103, %104 : vector<8x128xf32>
    %106 = vector.extract_strided_slice %105 {offsets = [0, 0], sizes = [8, 16], strides = [1, 1]} : vector<8x128xf32> to vector<8x16xf32>
    %107 = vector.extract_strided_slice %105 {offsets = [0, 32], sizes = [8, 16], strides = [1, 1]} : vector<8x128xf32> to vector<8x16xf32>
    %108 = vector.extract_strided_slice %105 {offsets = [0, 64], sizes = [8, 16], strides = [1, 1]} : vector<8x128xf32> to vector<8x16xf32>
    %109 = vector.extract_strided_slice %100 {offsets = [0, 96], sizes = [8, 16], strides = [1, 1]} : vector<8x128xf32> to vector<8x16xf32>
    %110 = math.tanh %109 : vector<8x16xf32>
    %111 = arith.mulf %107, %72 : vector<8x16xf32>
    %112 = arith.mulf %106, %110 : vector<8x16xf32>
    %113 = arith.addf %111, %112 : vector<8x16xf32>
    %114 = math.tanh %113 : vector<8x16xf32>
    %115 = arith.mulf %108, %114 : vector<8x16xf32>
    %cst_34 = arith.constant dense<0.000000e+00> : vector<8x128xf32>
    %116 = tpu.matmul %115, %9, %cst_34 {dimension_numbers = #tpu.dot_dimension_numbers<[1], [0], [0], [1], [0, 0, 1, 1], [], []>} : vector<8x16xf32>, vector<16x128xf32>, vector<8x128xf32> -> vector<8x128xf32>
    %cst_35 = arith.constant dense<0.000000e+00> : vector<8x128xf32>
    %117 = tpu.matmul %94, %10, %cst_35 {dimension_numbers = #tpu.dot_dimension_numbers<[1], [0], [0], [1], [0, 0, 1, 1], [], []>} : vector<8x16xf32>, vector<16x128xf32>, vector<8x128xf32> -> vector<8x128xf32>
    %118 = arith.addf %116, %117 : vector<8x128xf32>
    %119 = vector.broadcast %11 : vector<1x128xf32> to vector<8x128xf32>
    %120 = arith.addf %118, %119 : vector<8x128xf32>
    %121 = arith.negf %120 : vector<8x128xf32>
    %122 = math.exp %121 : vector<8x128xf32>
    %cst_36 = arith.constant 1.000000e+00 : f32
    %123 = vector.broadcast %cst_36 : f32 to vector<8x128xf32>
    %124 = arith.addf %123, %122 : vector<8x128xf32>
    %125 = arith.divf %123, %124 : vector<8x128xf32>
    %126 = vector.extract_strided_slice %125 {offsets = [0, 0], sizes = [8, 16], strides = [1, 1]} : vector<8x128xf32> to vector<8x16xf32>
    %127 = vector.extract_strided_slice %125 {offsets = [0, 32], sizes = [8, 16], strides = [1, 1]} : vector<8x128xf32> to vector<8x16xf32>
    %128 = vector.extract_strided_slice %125 {offsets = [0, 64], sizes = [8, 16], strides = [1, 1]} : vector<8x128xf32> to vector<8x16xf32>
    %129 = vector.extract_strided_slice %120 {offsets = [0, 96], sizes = [8, 16], strides = [1, 1]} : vector<8x128xf32> to vector<8x16xf32>
    %130 = math.tanh %129 : vector<8x16xf32>
    %131 = arith.mulf %127, %92 : vector<8x16xf32>
    %132 = arith.mulf %126, %130 : vector<8x16xf32>
    %133 = arith.addf %131, %132 : vector<8x16xf32>
    %134 = math.tanh %133 : vector<8x16xf32>
    %135 = arith.mulf %128, %134 : vector<8x16xf32>
    %c3_i32 = arith.constant 3 : i32
    %c8_i32_37 = arith.constant 8 : i32
    %136 = arith.muli %c3_i32, %c8_i32_37 : i32
    %137 = tpu.assume_multiple %136, 8 : i32
    %138 = arith.index_cast %137 : i32 to index
    %c0_38 = arith.constant 0 : index
    %139 = vector.load %arg11[%138, %c0_38] : memref<64x128xf32, #tpu.memory_space<vmem>>, vector<8x128xf32>
    %cst_39 = arith.constant dense<0.000000e+00> : vector<8x128xf32>
    %140 = tpu.matmul %115, %8, %cst_39 {dimension_numbers = #tpu.dot_dimension_numbers<[1], [0], [0], [1], [0, 0, 1, 1], [], []>} : vector<8x16xf32>, vector<16x128xf32>, vector<8x128xf32> -> vector<8x128xf32>
    %141 = arith.addf %139, %140 : vector<8x128xf32>
    %142 = arith.negf %141 : vector<8x128xf32>
    %143 = math.exp %142 : vector<8x128xf32>
    %cst_40 = arith.constant 1.000000e+00 : f32
    %144 = vector.broadcast %cst_40 : f32 to vector<8x128xf32>
    %145 = arith.addf %144, %143 : vector<8x128xf32>
    %146 = arith.divf %144, %145 : vector<8x128xf32>
    %147 = vector.extract_strided_slice %146 {offsets = [0, 0], sizes = [8, 16], strides = [1, 1]} : vector<8x128xf32> to vector<8x16xf32>
    %148 = vector.extract_strided_slice %146 {offsets = [0, 32], sizes = [8, 16], strides = [1, 1]} : vector<8x128xf32> to vector<8x16xf32>
    %149 = vector.extract_strided_slice %146 {offsets = [0, 64], sizes = [8, 16], strides = [1, 1]} : vector<8x128xf32> to vector<8x16xf32>
    %150 = vector.extract_strided_slice %141 {offsets = [0, 96], sizes = [8, 16], strides = [1, 1]} : vector<8x128xf32> to vector<8x16xf32>
    %151 = math.tanh %150 : vector<8x16xf32>
    %152 = arith.mulf %148, %113 : vector<8x16xf32>
    %153 = arith.mulf %147, %151 : vector<8x16xf32>
    %154 = arith.addf %152, %153 : vector<8x16xf32>
    %155 = math.tanh %154 : vector<8x16xf32>
    %156 = arith.mulf %149, %155 : vector<8x16xf32>
    %cst_41 = arith.constant dense<0.000000e+00> : vector<8x128xf32>
    %157 = tpu.matmul %156, %9, %cst_41 {dimension_numbers = #tpu.dot_dimension_numbers<[1], [0], [0], [1], [0, 0, 1, 1], [], []>} : vector<8x16xf32>, vector<16x128xf32>, vector<8x128xf32> -> vector<8x128xf32>
    %cst_42 = arith.constant dense<0.000000e+00> : vector<8x128xf32>
    %158 = tpu.matmul %135, %10, %cst_42 {dimension_numbers = #tpu.dot_dimension_numbers<[1], [0], [0], [1], [0, 0, 1, 1], [], []>} : vector<8x16xf32>, vector<16x128xf32>, vector<8x128xf32> -> vector<8x128xf32>
    %159 = arith.addf %157, %158 : vector<8x128xf32>
    %160 = vector.broadcast %11 : vector<1x128xf32> to vector<8x128xf32>
    %161 = arith.addf %159, %160 : vector<8x128xf32>
    %162 = arith.negf %161 : vector<8x128xf32>
    %163 = math.exp %162 : vector<8x128xf32>
    %cst_43 = arith.constant 1.000000e+00 : f32
    %164 = vector.broadcast %cst_43 : f32 to vector<8x128xf32>
    %165 = arith.addf %164, %163 : vector<8x128xf32>
    %166 = arith.divf %164, %165 : vector<8x128xf32>
    %167 = vector.extract_strided_slice %166 {offsets = [0, 0], sizes = [8, 16], strides = [1, 1]} : vector<8x128xf32> to vector<8x16xf32>
    %168 = vector.extract_strided_slice %166 {offsets = [0, 32], sizes = [8, 16], strides = [1, 1]} : vector<8x128xf32> to vector<8x16xf32>
    %169 = vector.extract_strided_slice %166 {offsets = [0, 64], sizes = [8, 16], strides = [1, 1]} : vector<8x128xf32> to vector<8x16xf32>
    %170 = vector.extract_strided_slice %161 {offsets = [0, 96], sizes = [8, 16], strides = [1, 1]} : vector<8x128xf32> to vector<8x16xf32>
    %171 = math.tanh %170 : vector<8x16xf32>
    %172 = arith.mulf %168, %133 : vector<8x16xf32>
    %173 = arith.mulf %167, %171 : vector<8x16xf32>
    %174 = arith.addf %172, %173 : vector<8x16xf32>
    %175 = math.tanh %174 : vector<8x16xf32>
    %176 = arith.mulf %169, %175 : vector<8x16xf32>
    %c4_i32 = arith.constant 4 : i32
    %c8_i32_44 = arith.constant 8 : i32
    %177 = arith.muli %c4_i32, %c8_i32_44 : i32
    %178 = tpu.assume_multiple %177, 8 : i32
    %179 = arith.index_cast %178 : i32 to index
    %c0_45 = arith.constant 0 : index
    %180 = vector.load %arg11[%179, %c0_45] : memref<64x128xf32, #tpu.memory_space<vmem>>, vector<8x128xf32>
    %cst_46 = arith.constant dense<0.000000e+00> : vector<8x128xf32>
    %181 = tpu.matmul %156, %8, %cst_46 {dimension_numbers = #tpu.dot_dimension_numbers<[1], [0], [0], [1], [0, 0, 1, 1], [], []>} : vector<8x16xf32>, vector<16x128xf32>, vector<8x128xf32> -> vector<8x128xf32>
    %182 = arith.addf %180, %181 : vector<8x128xf32>
    %183 = arith.negf %182 : vector<8x128xf32>
    %184 = math.exp %183 : vector<8x128xf32>
    %cst_47 = arith.constant 1.000000e+00 : f32
    %185 = vector.broadcast %cst_47 : f32 to vector<8x128xf32>
    %186 = arith.addf %185, %184 : vector<8x128xf32>
    %187 = arith.divf %185, %186 : vector<8x128xf32>
    %188 = vector.extract_strided_slice %187 {offsets = [0, 0], sizes = [8, 16], strides = [1, 1]} : vector<8x128xf32> to vector<8x16xf32>
    %189 = vector.extract_strided_slice %187 {offsets = [0, 32], sizes = [8, 16], strides = [1, 1]} : vector<8x128xf32> to vector<8x16xf32>
    %190 = vector.extract_strided_slice %187 {offsets = [0, 64], sizes = [8, 16], strides = [1, 1]} : vector<8x128xf32> to vector<8x16xf32>
    %191 = vector.extract_strided_slice %182 {offsets = [0, 96], sizes = [8, 16], strides = [1, 1]} : vector<8x128xf32> to vector<8x16xf32>
    %192 = math.tanh %191 : vector<8x16xf32>
    %193 = arith.mulf %189, %154 : vector<8x16xf32>
    %194 = arith.mulf %188, %192 : vector<8x16xf32>
    %195 = arith.addf %193, %194 : vector<8x16xf32>
    %196 = math.tanh %195 : vector<8x16xf32>
    %197 = arith.mulf %190, %196 : vector<8x16xf32>
    %cst_48 = arith.constant dense<0.000000e+00> : vector<8x128xf32>
    %198 = tpu.matmul %197, %9, %cst_48 {dimension_numbers = #tpu.dot_dimension_numbers<[1], [0], [0], [1], [0, 0, 1, 1], [], []>} : vector<8x16xf32>, vector<16x128xf32>, vector<8x128xf32> -> vector<8x128xf32>
    %cst_49 = arith.constant dense<0.000000e+00> : vector<8x128xf32>
    %199 = tpu.matmul %176, %10, %cst_49 {dimension_numbers = #tpu.dot_dimension_numbers<[1], [0], [0], [1], [0, 0, 1, 1], [], []>} : vector<8x16xf32>, vector<16x128xf32>, vector<8x128xf32> -> vector<8x128xf32>
    %200 = arith.addf %198, %199 : vector<8x128xf32>
    %201 = vector.broadcast %11 : vector<1x128xf32> to vector<8x128xf32>
    %202 = arith.addf %200, %201 : vector<8x128xf32>
    %203 = arith.negf %202 : vector<8x128xf32>
    %204 = math.exp %203 : vector<8x128xf32>
    %cst_50 = arith.constant 1.000000e+00 : f32
    %205 = vector.broadcast %cst_50 : f32 to vector<8x128xf32>
    %206 = arith.addf %205, %204 : vector<8x128xf32>
    %207 = arith.divf %205, %206 : vector<8x128xf32>
    %208 = vector.extract_strided_slice %207 {offsets = [0, 0], sizes = [8, 16], strides = [1, 1]} : vector<8x128xf32> to vector<8x16xf32>
    %209 = vector.extract_strided_slice %207 {offsets = [0, 32], sizes = [8, 16], strides = [1, 1]} : vector<8x128xf32> to vector<8x16xf32>
    %210 = vector.extract_strided_slice %207 {offsets = [0, 64], sizes = [8, 16], strides = [1, 1]} : vector<8x128xf32> to vector<8x16xf32>
    %211 = vector.extract_strided_slice %202 {offsets = [0, 96], sizes = [8, 16], strides = [1, 1]} : vector<8x128xf32> to vector<8x16xf32>
    %212 = math.tanh %211 : vector<8x16xf32>
    %213 = arith.mulf %209, %174 : vector<8x16xf32>
    %214 = arith.mulf %208, %212 : vector<8x16xf32>
    %215 = arith.addf %213, %214 : vector<8x16xf32>
    %216 = math.tanh %215 : vector<8x16xf32>
    %217 = arith.mulf %210, %216 : vector<8x16xf32>
    %c5_i32 = arith.constant 5 : i32
    %c8_i32_51 = arith.constant 8 : i32
    %218 = arith.muli %c5_i32, %c8_i32_51 : i32
    %219 = tpu.assume_multiple %218, 8 : i32
    %220 = arith.index_cast %219 : i32 to index
    %c0_52 = arith.constant 0 : index
    %221 = vector.load %arg11[%220, %c0_52] : memref<64x128xf32, #tpu.memory_space<vmem>>, vector<8x128xf32>
    %cst_53 = arith.constant dense<0.000000e+00> : vector<8x128xf32>
    %222 = tpu.matmul %197, %8, %cst_53 {dimension_numbers = #tpu.dot_dimension_numbers<[1], [0], [0], [1], [0, 0, 1, 1], [], []>} : vector<8x16xf32>, vector<16x128xf32>, vector<8x128xf32> -> vector<8x128xf32>
    %223 = arith.addf %221, %222 : vector<8x128xf32>
    %224 = arith.negf %223 : vector<8x128xf32>
    %225 = math.exp %224 : vector<8x128xf32>
    %cst_54 = arith.constant 1.000000e+00 : f32
    %226 = vector.broadcast %cst_54 : f32 to vector<8x128xf32>
    %227 = arith.addf %226, %225 : vector<8x128xf32>
    %228 = arith.divf %226, %227 : vector<8x128xf32>
    %229 = vector.extract_strided_slice %228 {offsets = [0, 0], sizes = [8, 16], strides = [1, 1]} : vector<8x128xf32> to vector<8x16xf32>
    %230 = vector.extract_strided_slice %228 {offsets = [0, 32], sizes = [8, 16], strides = [1, 1]} : vector<8x128xf32> to vector<8x16xf32>
    %231 = vector.extract_strided_slice %228 {offsets = [0, 64], sizes = [8, 16], strides = [1, 1]} : vector<8x128xf32> to vector<8x16xf32>
    %232 = vector.extract_strided_slice %223 {offsets = [0, 96], sizes = [8, 16], strides = [1, 1]} : vector<8x128xf32> to vector<8x16xf32>
    %233 = math.tanh %232 : vector<8x16xf32>
    %234 = arith.mulf %230, %195 : vector<8x16xf32>
    %235 = arith.mulf %229, %233 : vector<8x16xf32>
    %236 = arith.addf %234, %235 : vector<8x16xf32>
    %237 = math.tanh %236 : vector<8x16xf32>
    %238 = arith.mulf %231, %237 : vector<8x16xf32>
    %cst_55 = arith.constant dense<0.000000e+00> : vector<8x128xf32>
    %239 = tpu.matmul %238, %9, %cst_55 {dimension_numbers = #tpu.dot_dimension_numbers<[1], [0], [0], [1], [0, 0, 1, 1], [], []>} : vector<8x16xf32>, vector<16x128xf32>, vector<8x128xf32> -> vector<8x128xf32>
    %cst_56 = arith.constant dense<0.000000e+00> : vector<8x128xf32>
    %240 = tpu.matmul %217, %10, %cst_56 {dimension_numbers = #tpu.dot_dimension_numbers<[1], [0], [0], [1], [0, 0, 1, 1], [], []>} : vector<8x16xf32>, vector<16x128xf32>, vector<8x128xf32> -> vector<8x128xf32>
    %241 = arith.addf %239, %240 : vector<8x128xf32>
    %242 = vector.broadcast %11 : vector<1x128xf32> to vector<8x128xf32>
    %243 = arith.addf %241, %242 : vector<8x128xf32>
    %244 = arith.negf %243 : vector<8x128xf32>
    %245 = math.exp %244 : vector<8x128xf32>
    %cst_57 = arith.constant 1.000000e+00 : f32
    %246 = vector.broadcast %cst_57 : f32 to vector<8x128xf32>
    %247 = arith.addf %246, %245 : vector<8x128xf32>
    %248 = arith.divf %246, %247 : vector<8x128xf32>
    %249 = vector.extract_strided_slice %248 {offsets = [0, 0], sizes = [8, 16], strides = [1, 1]} : vector<8x128xf32> to vector<8x16xf32>
    %250 = vector.extract_strided_slice %248 {offsets = [0, 32], sizes = [8, 16], strides = [1, 1]} : vector<8x128xf32> to vector<8x16xf32>
    %251 = vector.extract_strided_slice %248 {offsets = [0, 64], sizes = [8, 16], strides = [1, 1]} : vector<8x128xf32> to vector<8x16xf32>
    %252 = vector.extract_strided_slice %243 {offsets = [0, 96], sizes = [8, 16], strides = [1, 1]} : vector<8x128xf32> to vector<8x16xf32>
    %253 = math.tanh %252 : vector<8x16xf32>
    %254 = arith.mulf %250, %215 : vector<8x16xf32>
    %255 = arith.mulf %249, %253 : vector<8x16xf32>
    %256 = arith.addf %254, %255 : vector<8x16xf32>
    %257 = math.tanh %256 : vector<8x16xf32>
    %258 = arith.mulf %251, %257 : vector<8x16xf32>
    %c6_i32 = arith.constant 6 : i32
    %c8_i32_58 = arith.constant 8 : i32
    %259 = arith.muli %c6_i32, %c8_i32_58 : i32
    %260 = tpu.assume_multiple %259, 8 : i32
    %261 = arith.index_cast %260 : i32 to index
    %c0_59 = arith.constant 0 : index
    %262 = vector.load %arg11[%261, %c0_59] : memref<64x128xf32, #tpu.memory_space<vmem>>, vector<8x128xf32>
    %cst_60 = arith.constant dense<0.000000e+00> : vector<8x128xf32>
    %263 = tpu.matmul %238, %8, %cst_60 {dimension_numbers = #tpu.dot_dimension_numbers<[1], [0], [0], [1], [0, 0, 1, 1], [], []>} : vector<8x16xf32>, vector<16x128xf32>, vector<8x128xf32> -> vector<8x128xf32>
    %264 = arith.addf %262, %263 : vector<8x128xf32>
    %265 = arith.negf %264 : vector<8x128xf32>
    %266 = math.exp %265 : vector<8x128xf32>
    %cst_61 = arith.constant 1.000000e+00 : f32
    %267 = vector.broadcast %cst_61 : f32 to vector<8x128xf32>
    %268 = arith.addf %267, %266 : vector<8x128xf32>
    %269 = arith.divf %267, %268 : vector<8x128xf32>
    %270 = vector.extract_strided_slice %269 {offsets = [0, 0], sizes = [8, 16], strides = [1, 1]} : vector<8x128xf32> to vector<8x16xf32>
    %271 = vector.extract_strided_slice %269 {offsets = [0, 32], sizes = [8, 16], strides = [1, 1]} : vector<8x128xf32> to vector<8x16xf32>
    %272 = vector.extract_strided_slice %269 {offsets = [0, 64], sizes = [8, 16], strides = [1, 1]} : vector<8x128xf32> to vector<8x16xf32>
    %273 = vector.extract_strided_slice %264 {offsets = [0, 96], sizes = [8, 16], strides = [1, 1]} : vector<8x128xf32> to vector<8x16xf32>
    %274 = math.tanh %273 : vector<8x16xf32>
    %275 = arith.mulf %271, %236 : vector<8x16xf32>
    %276 = arith.mulf %270, %274 : vector<8x16xf32>
    %277 = arith.addf %275, %276 : vector<8x16xf32>
    %278 = math.tanh %277 : vector<8x16xf32>
    %279 = arith.mulf %272, %278 : vector<8x16xf32>
    %cst_62 = arith.constant dense<0.000000e+00> : vector<8x128xf32>
    %280 = tpu.matmul %279, %9, %cst_62 {dimension_numbers = #tpu.dot_dimension_numbers<[1], [0], [0], [1], [0, 0, 1, 1], [], []>} : vector<8x16xf32>, vector<16x128xf32>, vector<8x128xf32> -> vector<8x128xf32>
    %cst_63 = arith.constant dense<0.000000e+00> : vector<8x128xf32>
    %281 = tpu.matmul %258, %10, %cst_63 {dimension_numbers = #tpu.dot_dimension_numbers<[1], [0], [0], [1], [0, 0, 1, 1], [], []>} : vector<8x16xf32>, vector<16x128xf32>, vector<8x128xf32> -> vector<8x128xf32>
    %282 = arith.addf %280, %281 : vector<8x128xf32>
    %283 = vector.broadcast %11 : vector<1x128xf32> to vector<8x128xf32>
    %284 = arith.addf %282, %283 : vector<8x128xf32>
    %285 = arith.negf %284 : vector<8x128xf32>
    %286 = math.exp %285 : vector<8x128xf32>
    %cst_64 = arith.constant 1.000000e+00 : f32
    %287 = vector.broadcast %cst_64 : f32 to vector<8x128xf32>
    %288 = arith.addf %287, %286 : vector<8x128xf32>
    %289 = arith.divf %287, %288 : vector<8x128xf32>
    %290 = vector.extract_strided_slice %289 {offsets = [0, 0], sizes = [8, 16], strides = [1, 1]} : vector<8x128xf32> to vector<8x16xf32>
    %291 = vector.extract_strided_slice %289 {offsets = [0, 32], sizes = [8, 16], strides = [1, 1]} : vector<8x128xf32> to vector<8x16xf32>
    %292 = vector.extract_strided_slice %289 {offsets = [0, 64], sizes = [8, 16], strides = [1, 1]} : vector<8x128xf32> to vector<8x16xf32>
    %293 = vector.extract_strided_slice %284 {offsets = [0, 96], sizes = [8, 16], strides = [1, 1]} : vector<8x128xf32> to vector<8x16xf32>
    %294 = math.tanh %293 : vector<8x16xf32>
    %295 = arith.mulf %291, %256 : vector<8x16xf32>
    %296 = arith.mulf %290, %294 : vector<8x16xf32>
    %297 = arith.addf %295, %296 : vector<8x16xf32>
    %298 = math.tanh %297 : vector<8x16xf32>
    %299 = arith.mulf %292, %298 : vector<8x16xf32>
    %c7_i32 = arith.constant 7 : i32
    %c8_i32_65 = arith.constant 8 : i32
    %300 = arith.muli %c7_i32, %c8_i32_65 : i32
    %301 = tpu.assume_multiple %300, 8 : i32
    %302 = arith.index_cast %301 : i32 to index
    %c0_66 = arith.constant 0 : index
    %303 = vector.load %arg11[%302, %c0_66] : memref<64x128xf32, #tpu.memory_space<vmem>>, vector<8x128xf32>
    %cst_67 = arith.constant dense<0.000000e+00> : vector<8x128xf32>
    %304 = tpu.matmul %279, %8, %cst_67 {dimension_numbers = #tpu.dot_dimension_numbers<[1], [0], [0], [1], [0, 0, 1, 1], [], []>} : vector<8x16xf32>, vector<16x128xf32>, vector<8x128xf32> -> vector<8x128xf32>
    %305 = arith.addf %303, %304 : vector<8x128xf32>
    %306 = arith.negf %305 : vector<8x128xf32>
    %307 = math.exp %306 : vector<8x128xf32>
    %cst_68 = arith.constant 1.000000e+00 : f32
    %308 = vector.broadcast %cst_68 : f32 to vector<8x128xf32>
    %309 = arith.addf %308, %307 : vector<8x128xf32>
    %310 = arith.divf %308, %309 : vector<8x128xf32>
    %311 = vector.extract_strided_slice %310 {offsets = [0, 0], sizes = [8, 16], strides = [1, 1]} : vector<8x128xf32> to vector<8x16xf32>
    %312 = vector.extract_strided_slice %310 {offsets = [0, 32], sizes = [8, 16], strides = [1, 1]} : vector<8x128xf32> to vector<8x16xf32>
    %313 = vector.extract_strided_slice %310 {offsets = [0, 64], sizes = [8, 16], strides = [1, 1]} : vector<8x128xf32> to vector<8x16xf32>
    %314 = vector.extract_strided_slice %305 {offsets = [0, 96], sizes = [8, 16], strides = [1, 1]} : vector<8x128xf32> to vector<8x16xf32>
    %315 = math.tanh %314 : vector<8x16xf32>
    %316 = arith.mulf %312, %277 : vector<8x16xf32>
    %317 = arith.mulf %311, %315 : vector<8x16xf32>
    %318 = arith.addf %316, %317 : vector<8x16xf32>
    %319 = math.tanh %318 : vector<8x16xf32>
    %320 = arith.mulf %313, %319 : vector<8x16xf32>
    %cst_69 = arith.constant dense<0.000000e+00> : vector<8x128xf32>
    %321 = tpu.matmul %320, %9, %cst_69 {dimension_numbers = #tpu.dot_dimension_numbers<[1], [0], [0], [1], [0, 0, 1, 1], [], []>} : vector<8x16xf32>, vector<16x128xf32>, vector<8x128xf32> -> vector<8x128xf32>
    %cst_70 = arith.constant dense<0.000000e+00> : vector<8x128xf32>
    %322 = tpu.matmul %299, %10, %cst_70 {dimension_numbers = #tpu.dot_dimension_numbers<[1], [0], [0], [1], [0, 0, 1, 1], [], []>} : vector<8x16xf32>, vector<16x128xf32>, vector<8x128xf32> -> vector<8x128xf32>
    %323 = arith.addf %321, %322 : vector<8x128xf32>
    %324 = vector.broadcast %11 : vector<1x128xf32> to vector<8x128xf32>
    %325 = arith.addf %323, %324 : vector<8x128xf32>
    %326 = arith.negf %325 : vector<8x128xf32>
    %327 = math.exp %326 : vector<8x128xf32>
    %cst_71 = arith.constant 1.000000e+00 : f32
    %328 = vector.broadcast %cst_71 : f32 to vector<8x128xf32>
    %329 = arith.addf %328, %327 : vector<8x128xf32>
    %330 = arith.divf %328, %329 : vector<8x128xf32>
    %331 = vector.extract_strided_slice %330 {offsets = [0, 0], sizes = [8, 16], strides = [1, 1]} : vector<8x128xf32> to vector<8x16xf32>
    %332 = vector.extract_strided_slice %330 {offsets = [0, 32], sizes = [8, 16], strides = [1, 1]} : vector<8x128xf32> to vector<8x16xf32>
    %333 = vector.extract_strided_slice %330 {offsets = [0, 64], sizes = [8, 16], strides = [1, 1]} : vector<8x128xf32> to vector<8x16xf32>
    %334 = vector.extract_strided_slice %325 {offsets = [0, 96], sizes = [8, 16], strides = [1, 1]} : vector<8x128xf32> to vector<8x16xf32>
    %335 = math.tanh %334 : vector<8x16xf32>
    %336 = arith.mulf %332, %297 : vector<8x16xf32>
    %337 = arith.mulf %331, %335 : vector<8x16xf32>
    %338 = arith.addf %336, %337 : vector<8x16xf32>
    %339 = math.tanh %338 : vector<8x16xf32>
    %340 = arith.mulf %333, %339 : vector<8x16xf32>
    %c8_i32_72 = arith.constant 8 : i32
    %c0_73 = arith.constant 0 : index
    %c0_74 = arith.constant 0 : index
    %341 = vector.load %arg8[%c0_73, %c0_74] : memref<16x128xf32, #tpu.memory_space<vmem>>, vector<16x128xf32>
    %cst_75 = arith.constant dense<0.000000e+00> : vector<8x128xf32>
    %342 = tpu.matmul %340, %341, %cst_75 {dimension_numbers = #tpu.dot_dimension_numbers<[1], [0], [0], [1], [0, 0, 1, 1], [], []>} : vector<8x16xf32>, vector<16x128xf32>, vector<8x128xf32> -> vector<8x128xf32>
    %c0_76 = arith.constant 0 : index
    %c0_77 = arith.constant 0 : index
    %343 = vector.load %arg9[%c0_76, %c0_77] : memref<1x128xf32, #tpu.memory_space<vmem>>, vector<1x128xf32>
    %344 = vector.broadcast %343 : vector<1x128xf32> to vector<8x128xf32>
    %345 = arith.addf %342, %344 : vector<8x128xf32>
    %cst_78 = arith.constant dense<0xFF800000> : vector<8xf32>
    %346 = vector.multi_reduction <maximumf>, %345, %cst_78 [1] : vector<8x128xf32> to vector<8xf32>
    %347 = vector.shape_cast %346 : vector<8xf32> to vector<8x1xf32>
    %348 = vector.broadcast %347 : vector<8x1xf32> to vector<8x128xf32>
    %349 = arith.subf %345, %348 : vector<8x128xf32>
    %350 = math.exp %349 : vector<8x128xf32>
    %cst_79 = arith.constant dense<0.000000e+00> : vector<8xf32>
    %351 = vector.multi_reduction <add>, %350, %cst_79 [1] : vector<8x128xf32> to vector<8xf32>
    %352 = vector.shape_cast %351 : vector<8xf32> to vector<8x1xf32>
    %353 = vector.broadcast %352 : vector<8x1xf32> to vector<8x128xf32>
    %354 = arith.divf %350, %353 : vector<8x128xf32>
    %c0_80 = arith.constant 0 : index
    %c0_81 = arith.constant 0 : index
    %355 = vector.load %arg10[%c0_80, %c0_81] : memref<8x128xf32, #tpu.memory_space<vmem>>, vector<8x128xf32>
    tpu.vector_store %arg10[%c0_80, %c0_81], %354 {strides = array<i32>} : memref<8x128xf32, #tpu.memory_space<vmem>>, vector<8x128xf32>,
    return
  }
  func.func @transform_0(%arg0: i32) -> (i32, i32, i32) {
    %c0_i32 = arith.constant 0 : i32
    %c0_i32_0 = arith.constant 0 : i32
    %c0_i32_1 = arith.constant 0 : i32
    return %arg0, %c0_i32, %c0_i32_0 : i32, i32, i32
  }
  func.func @transform_1(%arg0: i32) -> (i32, i32) {
    %c0_i32 = arith.constant 0 : i32
    %c0_i32_0 = arith.constant 0 : i32
    %c0_i32_1 = arith.constant 0 : i32
    return %c0_i32, %c0_i32_0 : i32, i32
  }
  func.func @transform_2(%arg0: i32) -> (i32, i32) {
    %c0_i32 = arith.constant 0 : i32
    %c0_i32_0 = arith.constant 0 : i32
    %c0_i32_1 = arith.constant 0 : i32
    return %c0_i32, %c0_i32_0 : i32, i32
  }
  func.func @transform_3(%arg0: i32) -> (i32, i32) {
    %c0_i32 = arith.constant 0 : i32
    %c0_i32_0 = arith.constant 0 : i32
    %c0_i32_1 = arith.constant 0 : i32
    return %c0_i32, %c0_i32_0 : i32, i32
  }
  func.func @transform_4(%arg0: i32) -> (i32, i32) {
    %c0_i32 = arith.constant 0 : i32
    %c0_i32_0 = arith.constant 0 : i32
    %c0_i32_1 = arith.constant 0 : i32
    return %c0_i32, %c0_i32_0 : i32, i32
  }
  func.func @transform_5(%arg0: i32) -> (i32, i32) {
    %c0_i32 = arith.constant 0 : i32
    %c0_i32_0 = arith.constant 0 : i32
    %c0_i32_1 = arith.constant 0 : i32
    return %c0_i32, %c0_i32_0 : i32, i32
  }
  func.func @transform_6(%arg0: i32) -> (i32, i32) {
    %c0_i32 = arith.constant 0 : i32
    %c0_i32_0 = arith.constant 0 : i32
    %c0_i32_1 = arith.constant 0 : i32
    return %c0_i32, %c0_i32_0 : i32, i32
  }
  func.func @transform_7(%arg0: i32) -> (i32, i32) {
    %c0_i32 = arith.constant 0 : i32
    %c0_i32_0 = arith.constant 0 : i32
    %c0_i32_1 = arith.constant 0 : i32
    return %c0_i32, %c0_i32_0 : i32, i32
  }
  func.func @transform_8(%arg0: i32) -> (i32, i32) {
    %c0_i32 = arith.constant 0 : i32
    %c0_i32_0 = arith.constant 0 : i32
    %c0_i32_1 = arith.constant 0 : i32
    return %c0_i32, %c0_i32_0 : i32, i32
  }
  func.func @transform_9(%arg0: i32) -> (i32, i32) {
    %c0_i32 = arith.constant 0 : i32
    %c0_i32_0 = arith.constant 0 : i32
    return %arg0, %c0_i32 : i32, i32
  }
}

</mosaic_0001>

<llo_original>
// kernel: context_lstm_forward.1
$region0: #{context_lstm_forward.1}
  #allocation0 [shape = 'u32[]', space=smem, size = 0x4, offset = 0x4, fixed_abs, tag = 'smem constant byte address 0x4 - core index']
  #allocation1 [shape = 'u32[72,128]{1,0:T(1,128)}', space=vmem, size = 0x9000, scoped, tag = 'internal scratch']
  #allocation2 [shape = 'f32[64,128]{1,0:T(8,128)}', space=vmem, size = 0x8000, scoped, tag = 'scratch operand']
  %s0 = inlined_call_operand.vmem [shape: f32[1,64,8], index: 0, kind: input, shape index: {}]
  %s1 = inlined_call_operand.vmem [shape: f32[8,128], index: 1, kind: input, shape index: {}]
  %s2 = inlined_call_operand.vmem [shape: f32[16,128], index: 2, kind: input, shape index: {}]
  %s3 = inlined_call_operand.vmem [shape: f32[1,128], index: 3, kind: input, shape index: {}]
  %s4 = inlined_call_operand.vmem [shape: f32[16,128], index: 4, kind: input, shape index: {}]
  %s5 = inlined_call_operand.vmem [shape: f32[16,128], index: 5, kind: input, shape index: {}]
  %s6 = inlined_call_operand.vmem [shape: f32[1,128], index: 6, kind: input, shape index: {}]
  %s7 = inlined_call_operand.vmem [shape: f32[16,128], index: 7, kind: input, shape index: {}]
  %s8 = inlined_call_operand.vmem [shape: f32[1,128], index: 8, kind: input, shape index: {}]
  %s9 = inlined_call_operand.vmem [shape: f32[8,128], index: 9, kind: output, shape index: {}]
  %s10 = sld [smem:[#allocation0]]
  $region46: #{context_lstm_forward.1} parent=0
    _
  %s12 = ssub.s32 1, %s10
  %s13 = scalar_select 0, %s12, %s10
  // Predicated region
  $region2: #{context_lstm_forward.1} parent=0 // pred_check
    _
  $region3: #{context_lstm_forward.1} parent=0 // pred_check_branch
    %15 = sbr.rel (0) target = $region5
  $region4: #{context_lstm_forward.1} parent=0 // pred_region
    _
  $region5: #{context_lstm_forward.1} parent=0 // pred_fallthru
    _
  // Predicated region
  $region6: #{context_lstm_forward.1} parent=0 // pred_check
    _
  $region7: #{context_lstm_forward.1} parent=0 // pred_check_branch
    %17 = sbr.rel (0) target = $region9
  $region8: #{context_lstm_forward.1} parent=0 // pred_region
    _
  $region9: #{context_lstm_forward.1} parent=0 // pred_fallthru
    _
  // Predicated region
  $region10: #{context_lstm_forward.1} parent=0 // pred_check
    _
  $region11: #{context_lstm_forward.1} parent=0 // pred_check_branch
    %19 = sbr.rel (0) target = $region13
  $region12: #{context_lstm_forward.1} parent=0 // pred_region
    _
  $region13: #{context_lstm_forward.1} parent=0 // pred_fallthru
    _
  // Predicated region
  $region14: #{context_lstm_forward.1} parent=0 // pred_check
    _
  $region15: #{context_lstm_forward.1} parent=0 // pred_check_branch
    %21 = sbr.rel (0) target = $region17
  $region16: #{context_lstm_forward.1} parent=0 // pred_region
    _
  $region17: #{context_lstm_forward.1} parent=0 // pred_fallthru
    _
  // Predicated region
  $region18: #{context_lstm_forward.1} parent=0 // pred_check
    _
  $region19: #{context_lstm_forward.1} parent=0 // pred_check_branch
    %23 = sbr.rel (0) target = $region21
  $region20: #{context_lstm_forward.1} parent=0 // pred_region
    _
  $region21: #{context_lstm_forward.1} parent=0 // pred_fallthru
    _
  // Predicated region
  $region22: #{context_lstm_forward.1} parent=0 // pred_check
    _
  $region23: #{context_lstm_forward.1} parent=0 // pred_check_branch
    %25 = sbr.rel (0) target = $region25
  $region24: #{context_lstm_forward.1} parent=0 // pred_region
    _
  $region25: #{context_lstm_forward.1} parent=0 // pred_fallthru
    _
  // Predicated region
  $region26: #{context_lstm_forward.1} parent=0 // pred_check
    _
  $region27: #{context_lstm_forward.1} parent=0 // pred_check_branch
    %27 = sbr.rel (0) target = $region29
  $region28: #{context_lstm_forward.1} parent=0 // pred_region
    _
  $region29: #{context_lstm_forward.1} parent=0 // pred_fallthru
    _
  // Predicated region
  $region30: #{context_lstm_forward.1} parent=0 // pred_check
    _
  $region31: #{context_lstm_forward.1} parent=0 // pred_check_branch
    %29 = sbr.rel (0) target = $region33
  $region32: #{context_lstm_forward.1} parent=0 // pred_region
    _
  $region33: #{context_lstm_forward.1} parent=0 // pred_fallthru
    _
  // Predicated region
  $region34: #{context_lstm_forward.1} parent=0 // pred_check
    _
  $region35: #{context_lstm_forward.1} parent=0 // pred_check_branch
    %31 = sbr.rel (0) target = $region37
  $region36: #{context_lstm_forward.1} parent=0 // pred_region
    _
  $region37: #{context_lstm_forward.1} parent=0 // pred_fallthru
    _
  %v32 = vld [vmem:[%s0] sm:$0xff]
  %v33 = vld [vmem:[%s0 + $0x8] sm:$0xff]
  %v34 = vld [vmem:[%s0 + $0x10] sm:$0xff]
  %v35 = vld [vmem:[%s0 + $0x18] sm:$0xff]
  %v36 = vld [vmem:[%s0 + $0x20] sm:$0xff]
  %v37 = vld [vmem:[%s0 + $0x28] sm:$0xff]
  %v38 = vld [vmem:[%s0 + $0x30] sm:$0xff]
  %v39 = vld [vmem:[%s0 + $0x38] sm:$0xff]
  %v40 = vld [vmem:[%s1] sm:$0xff]
  %v41 = vld [vmem:[%s3] sm:$0x1]
  %v43 = vperm.slane %v41, 0
  %vm45 = vcmask 64512
  %v47 = vsel %vm45, %v32, 0
  %v50 = vsel %vm45, %v33, 0
  %v53 = vsel %vm45, %v34, 0
  %v56 = vsel %vm45, %v35, 0
  %v59 = vsel %vm45, %v36, 0
  %v62 = vsel %vm45, %v37, 0
  %v65 = vsel %vm45, %v38, 0
  %v68 = vsel %vm45, %v39, 0
  %70 = vmatpush.msra.mxu0 0.0
  %71 = vmatpush.msra.mxu0 0.0
  %72 = vmatpush.msra.mxu0 0.0
  %73 = vmatpush.msra.mxu0 0.0
  %74 = vmatpush.msra.mxu0 0.0
  %75 = vmatpush.msra.mxu0 0.0
  %76 = vmatpush.msra.mxu0 0.0
  %77 = vmatpush.msra.mxu0 0.0
  %78 = vmatpush.msra.mxu0 0.0
  %79 = vmatpush.msra.mxu0 0.0
  %80 = vmatpush.msra.mxu0 0.0
  %81 = vmatpush.msra.mxu0 0.0
  %82 = vmatpush.msra.mxu0 0.0
  %83 = vmatpush.msra.mxu0 0.0
  %84 = vmatpush.msra.mxu0 0.0
  %85 = vmatpush.msra.mxu0 %v40
  %86 = vmatmul.f32.gmra.mxu0 %v47
  %v87 = vpop.f32.mrf.mxu0
  %v88 = vadd.f32 %v43, %v87
  %89 = vmatmul.f32.gmra.mxu0 %v50
  %v90 = vpop.f32.mrf.mxu0
  %v91 = vadd.f32 %v43, %v90
  %92 = vmatmul.f32.gmra.mxu0 %v53
  %v93 = vpop.f32.mrf.mxu0
  %v94 = vadd.f32 %v43, %v93
  %95 = vmatmul.f32.gmra.mxu0 %v56
  %v96 = vpop.f32.mrf.mxu0
  %v97 = vadd.f32 %v43, %v96
  %98 = vmatmul.f32.gmra.mxu0 %v59
  %v99 = vpop.f32.mrf.mxu0
  %v100 = vadd.f32 %v43, %v99
  %101 = vmatmul.f32.gmra.mxu0 %v62
  %v102 = vpop.f32.mrf.mxu0
  %v103 = vadd.f32 %v43, %v102
  %104 = vmatmul.f32.gmra.mxu0 %v65
  %v105 = vpop.f32.mrf.mxu0
  %v106 = vadd.f32 %v43, %v105
  %107 = vmatmul.f32.gmra.mxu0 %v68
  %v108 = vpop.f32.mrf.mxu0
  %v109 = vadd.f32 %v43, %v108
  %110 = vdwg.mxu0
  %111 = vst [vmem:[#allocation2] sm:$0xff] %v88
  %112 = vst [vmem:[#allocation2 + $0x8] sm:$0xff] %v91
  %113 = vst [vmem:[#allocation2 + $0x10] sm:$0xff] %v94
  %114 = vst [vmem:[#allocation2 + $0x18] sm:$0xff] %v97
  %115 = vst [vmem:[#allocation2 + $0x20] sm:$0xff] %v100
  %116 = vst [vmem:[#allocation2 + $0x28] sm:$0xff] %v103
  %117 = vst [vmem:[#allocation2 + $0x30] sm:$0xff] %v106
  %118 = vst [vmem:[#allocation2 + $0x38] sm:$0xff] %v109
  %v119 = vld [vmem:[%s2] sm:$0xff]
  %v120 = vld [vmem:[%s2 + $0x8] sm:$0xff]
  %v121 = vld [vmem:[%s4] sm:$0xff]
  %v122 = vld [vmem:[%s4 + $0x8] sm:$0xff]
  %v123 = vld [vmem:[%s5] sm:$0xff]
  %v124 = vld [vmem:[%s5 + $0x8] sm:$0xff]
  %v125 = vld [vmem:[%s6] sm:$0x1]
  %v126 = vld [vmem:[#allocation2] sm:$0xff]
  %vm127 = vcmask 130048
  %v129 = vsel %vm127, 0.0, 0
  %131 = vmatpush.msra.mxu0 0.0
  %132 = vmatpush.msra.mxu0 0.0
  %133 = vmatpush.msra.mxu0 0.0
  %134 = vmatpush.msra.mxu0 0.0
  %135 = vmatpush.msra.mxu0 0.0
  %136 = vmatpush.msra.mxu0 0.0
  %137 = vmatpush.msra.mxu0 0.0
  %138 = vmatpush.msra.mxu0 0.0
  %139 = vmatpush.msra.mxu0 0.0
  %140 = vmatpush.msra.mxu0 0.0
  %141 = vmatpush.msra.mxu0 0.0
  %142 = vmatpush.msra.mxu0 0.0
  %143 = vmatpush.msra.mxu0 0.0
  %144 = vmatpush.msra.mxu0 0.0
  %145 = vmatpush.msra.mxu0 %v120
  %146 = vmatpush.msra.mxu0 %v119
  %147 = vmatmul.f32.gmra.mxu0 %v129
  %v148 = vpop.f32.mrf.mxu0
  %v149 = vadd.f32 0.0, %v148
  %150 = vdwg.mxu0
  %v151 = vadd.f32 %v126, %v149
  %v152 = vxor.u32 %v151, 2147483648
  %v153 = vmul.f32 %v152, 1.442695
  %v154 = vpow.pop %v153
  %v155 = vadd.f32 %v154, 1.0
  %v156 = vrcp.pop %v155
  %v157 = vmul.f32 %v155, %v156
  %v158 = vsub.f32 1.0, %v157
  %v159 = vmul.f32 %v156, %v158
  %v160 = vadd.f32 %v156, %v159
  %vm161 = vweird.f32 %v155
  %vm162 = vweird.f32 %v156
  %vm163 = vmor %vm161, %vm162
  %v164 = vsel %vm163, %v156, %v160
  %v165 = vand.u32 2147483647, %v155
  %vm166 = vcmp.eq.f32.partialorder %v165, 8.507059e+37
  %v167 = vand.u32 %v155, 2147483648
  %v168 = vor.u32 1.1754944e-38, %v167
  %v169 = vsel %vm166, %v168, %v164
  %v170 = vmul.f32 1.0, %v169
  %v171 = vtanh.pop %v151
  %v172 = vmul.f32 %v170, 0.0
  %174 = vrot.lane.b32.xlu0 %v171, 32
  %v175 = vpop.permute.xlu0 %174
  %v177 = vmul.f32 %v170, %v175
  %179 = vrot.lane.b32.xlu0 %v177, 32
  %v180 = vpop.permute.xlu0 %179
  %v182 = vadd.f32 %v172, %v180
  %v183 = vtanh.pop %v182
  %185 = vrot.lane.b32.xlu0 %v183, 32
  %v186 = vpop.permute.xlu0 %185
  %v188 = vmul.f32 %v170, %v186
  %189 = vmatpush.msra.mxu0 0.0
  %190 = vmatpush.msra.mxu0 0.0
  %191 = vmatpush.msra.mxu0 0.0
  %192 = vmatpush.msra.mxu0 0.0
  %193 = vmatpush.msra.mxu0 0.0
  %194 = vmatpush.msra.mxu0 0.0
  %195 = vmatpush.msra.mxu0 0.0
  %196 = vmatpush.msra.mxu0 0.0
  %197 = vmatpush.msra.mxu0 0.0
  %198 = vmatpush.msra.mxu0 0.0
  %199 = vmatpush.msra.mxu0 0.0
  %200 = vmatpush.msra.mxu0 0.0
  %201 = vmatpush.msra.mxu0 0.0
  %202 = vmatpush.msra.mxu0 0.0
  %203 = vmatpush.msra.mxu0 %v124
  %204 = vmatpush.msra.mxu0 %v123
  %205 = vmatmul.f32.gmra.mxu0 %v129
  %v206 = vpop.f32.mrf.mxu0
  %v207 = vadd.f32 0.0, %v206
  %208 = vdwg.mxu0
  %210 = vrot.lane.b32.xlu0 %v188, 64
  %v211 = vpop.permute.xlu0 %210
  %v212 = vsel %vm127, %v211, 0
  %214 = vmatpush.msra.mxu0 0.0
  %215 = vmatpush.msra.mxu0 0.0
  %216 = vmatpush.msra.mxu0 0.0
  %217 = vmatpush.msra.mxu0 0.0
  %218 = vmatpush.msra.mxu0 0.0
  %219 = vmatpush.msra.mxu0 0.0
  %220 = vmatpush.msra.mxu0 0.0
  %221 = vmatpush.msra.mxu0 0.0
  %222 = vmatpush.msra.mxu0 0.0
  %223 = vmatpush.msra.mxu0 0.0
  %224 = vmatpush.msra.mxu0 0.0
  %225 = vmatpush.msra.mxu0 0.0
  %226 = vmatpush.msra.mxu0 0.0
  %227 = vmatpush.msra.mxu0 0.0
  %228 = vmatpush.msra.mxu0 %v122
  %229 = vmatpush.msra.mxu0 %v121
  %230 = vmatmul.f32.gmra.mxu0 %v212
  %v231 = vpop.f32.mrf.mxu0
  %v232 = vadd.f32 %v207, %v231
  %233 = vdwg.mxu0
  %v235 = vperm.slane %v125, 0
  %v237 = vadd.f32 %v232, %v235
  %v238 = vxor.u32 %v237, 2147483648
  %v239 = vmul.f32 %v238, 1.442695
  %v240 = vpow.pop %v239
  %v241 = vadd.f32 %v240, 1.0
  %v242 = vrcp.pop %v241
  %v243 = vmul.f32 %v241, %v242
  %v244 = vsub.f32 1.0, %v243
  %v245 = vmul.f32 %v242, %v244
  %v246 = vadd.f32 %v242, %v245
  %vm247 = vweird.f32 %v241
  %vm248 = vweird.f32 %v242
  %vm249 = vmor %vm247, %vm248
  %v250 = vsel %vm249, %v242, %v246
  %v251 = vand.u32 2147483647, %v241
  %vm252 = vcmp.eq.f32.partialorder %v251, 8.507059e+37
  %v253 = vand.u32 %v241, 2147483648
  %v254 = vor.u32 1.1754944e-38, %v253
  %v255 = vsel %vm252, %v254, %v250
  %v256 = vmul.f32 1.0, %v255
  %v257 = vtanh.pop %v237
  %v258 = vmul.f32 %v256, 0.0
  %260 = vrot.lane.b32.xlu0 %v257, 32
  %v261 = vpop.permute.xlu0 %260
  %v263 = vmul.f32 %v256, %v261
  %265 = vrot.lane.b32.xlu0 %v263, 32
  %v266 = vpop.permute.xlu0 %265
  %v268 = vadd.f32 %v258, %v266
  %v269 = vtanh.pop %v268
  %271 = vrot.lane.b32.xlu0 %v269, 32
  %v272 = vpop.permute.xlu0 %271
  %v274 = vmul.f32 %v256, %v272
  %s275 = scalar_lea.vmem [#allocation2], 8
  %v276 = vld [vmem:[%s275] sm:$0xff]
  %277 = vmatpush.msra.mxu0 0.0
  %278 = vmatpush.msra.mxu0 0.0
  %279 = vmatpush.msra.mxu0 0.0
  %280 = vmatpush.msra.mxu0 0.0
  %281 = vmatpush.msra.mxu0 0.0
  %282 = vmatpush.msra.mxu0 0.0
  %283 = vmatpush.msra.mxu0 0.0
  %284 = vmatpush.msra.mxu0 0.0
  %285 = vmatpush.msra.mxu0 0.0
  %286 = vmatpush.msra.mxu0 0.0
  %287 = vmatpush.msra.mxu0 0.0
  %288 = vmatpush.msra.mxu0 0.0
  %289 = vmatpush.msra.mxu0 0.0
  %290 = vmatpush.msra.mxu0 0.0
  %291 = vmatpush.msra.mxu0 %v120
  %292 = vmatpush.msra.mxu0 %v119
  %293 = vmatmul.f32.gmra.mxu0 %v212
  %v294 = vpop.f32.mrf.mxu0
  %v295 = vadd.f32 0.0, %v294
  %296 = vdwg.mxu0
  %v297 = vadd.f32 %v276, %v295
  %v298 = vxor.u32 %v297, 2147483648
  %v299 = vmul.f32 %v298, 1.442695
  %v300 = vpow.pop %v299
  %v301 = vadd.f32 %v300, 1.0
  %v302 = vrcp.pop %v301
  %v303 = vmul.f32 %v301, %v302
  %v304 = vsub.f32 1.0, %v303
  %v305 = vmul.f32 %v302, %v304
  %v306 = vadd.f32 %v302, %v305
  %vm307 = vweird.f32 %v301
  %vm308 = vweird.f32 %v302
  %vm309 = vmor %vm307, %vm308
  %v310 = vsel %vm309, %v302, %v306
  %v311 = vand.u32 2147483647, %v301
  %vm312 = vcmp.eq.f32.partialorder %v311, 8.507059e+37
  %v313 = vand.u32 %v301, 2147483648
  %v314 = vor.u32 1.1754944e-38, %v313
  %v315 = vsel %vm312, %v314, %v310
  %v316 = vmul.f32 1.0, %v315
  %v317 = vtanh.pop %v297
  %v318 = vmul.f32 %v316, %v182
  %320 = vrot.lane.b32.xlu0 %v317, 32
  %v321 = vpop.permute.xlu0 %320
  %v323 = vmul.f32 %v316, %v321
  %325 = vrot.lane.b32.xlu0 %v323, 32
  %v326 = vpop.permute.xlu0 %325
  %v328 = vadd.f32 %v318, %v326
  %v329 = vtanh.pop %v328
  %331 = vrot.lane.b32.xlu0 %v329, 32
  %v332 = vpop.permute.xlu0 %331
  %v334 = vmul.f32 %v316, %v332
  %336 = vrot.lane.b32.xlu0 %v274, 64
  %v337 = vpop.permute.xlu0 %336
  %v338 = vsel %vm127, %v337, 0
  %340 = vmatpush.msra.mxu0 0.0
  %341 = vmatpush.msra.mxu0 0.0
  %342 = vmatpush.msra.mxu0 0.0
  %343 = vmatpush.msra.mxu0 0.0
  %344 = vmatpush.msra.mxu0 0.0
  %345 = vmatpush.msra.mxu0 0.0
  %346 = vmatpush.msra.mxu0 0.0
  %347 = vmatpush.msra.mxu0 0.0
  %348 = vmatpush.msra.mxu0 0.0
  %349 = vmatpush.msra.mxu0 0.0
  %350 = vmatpush.msra.mxu0 0.0
  %351 = vmatpush.msra.mxu0 0.0
  %352 = vmatpush.msra.mxu0 0.0
  %353 = vmatpush.msra.mxu0 0.0
  %354 = vmatpush.msra.mxu0 %v124
  %355 = vmatpush.msra.mxu0 %v123
  %356 = vmatmul.f32.gmra.mxu0 %v338
  %v357 = vpop.f32.mrf.mxu0
  %v358 = vadd.f32 0.0, %v357
  %359 = vdwg.mxu0
  %361 = vrot.lane.b32.xlu0 %v334, 64
  %v362 = vpop.permute.xlu0 %361
  %v363 = vsel %vm127, %v362, 0
  %365 = vmatpush.msra.mxu0 0.0
  %366 = vmatpush.msra.mxu0 0.0
  %367 = vmatpush.msra.mxu0 0.0
  %368 = vmatpush.msra.mxu0 0.0
  %369 = vmatpush.msra.mxu0 0.0
  %370 = vmatpush.msra.mxu0 0.0
  %371 = vmatpush.msra.mxu0 0.0
  %372 = vmatpush.msra.mxu0 0.0
  %373 = vmatpush.msra.mxu0 0.0
  %374 = vmatpush.msra.mxu0 0.0
  %375 = vmatpush.msra.mxu0 0.0
  %376 = vmatpush.msra.mxu0 0.0
  %377 = vmatpush.msra.mxu0 0.0
  %378 = vmatpush.msra.mxu0 0.0
  %379 = vmatpush.msra.mxu0 %v122
  %380 = vmatpush.msra.mxu0 %v121
  %381 = vmatmul.f32.gmra.mxu0 %v363
  %v382 = vpop.f32.mrf.mxu0
  %v383 = vadd.f32 %v358, %v382
  %384 = vdwg.mxu0
  %v385 = vadd.f32 %v383, %v235
  %v386 = vxor.u32 %v385, 2147483648
  %v387 = vmul.f32 %v386, 1.442695
  %v388 = vpow.pop %v387
  %v389 = vadd.f32 %v388, 1.0
  %v390 = vrcp.pop %v389
  %v391 = vmul.f32 %v389, %v390
  %v392 = vsub.f32 1.0, %v391
  %v393 = vmul.f32 %v390, %v392
  %v394 = vadd.f32 %v390, %v393
  %vm395 = vweird.f32 %v389
  %vm396 = vweird.f32 %v390
  %vm397 = vmor %vm395, %vm396
  %v398 = vsel %vm397, %v390, %v394
  %v399 = vand.u32 2147483647, %v389
  %vm400 = vcmp.eq.f32.partialorder %v399, 8.507059e+37
  %v401 = vand.u32 %v389, 2147483648
  %v402 = vor.u32 1.1754944e-38, %v401
  %v403 = vsel %vm400, %v402, %v398
  %v404 = vmul.f32 1.0, %v403
  %v405 = vtanh.pop %v385
  %v406 = vmul.f32 %v404, %v268
  %408 = vrot.lane.b32.xlu0 %v405, 32
  %v409 = vpop.permute.xlu0 %408
  %v411 = vmul.f32 %v404, %v409
  %413 = vrot.lane.b32.xlu0 %v411, 32
  %v414 = vpop.permute.xlu0 %413
  %v416 = vadd.f32 %v406, %v414
  %v417 = vtanh.pop %v416
  %419 = vrot.lane.b32.xlu0 %v417, 32
  %v420 = vpop.permute.xlu0 %419
  %v422 = vmul.f32 %v404, %v420
  %s423 = scalar_lea.vmem [#allocation2], 16
  %v424 = vld [vmem:[%s423] sm:$0xff]
  %425 = vmatpush.msra.mxu0 0.0
  %426 = vmatpush.msra.mxu0 0.0
  %427 = vmatpush.msra.mxu0 0.0
  %428 = vmatpush.msra.mxu0 0.0
  %429 = vmatpush.msra.mxu0 0.0
  %430 = vmatpush.msra.mxu0 0.0
  %431 = vmatpush.msra.mxu0 0.0
  %432 = vmatpush.msra.mxu0 0.0
  %433 = vmatpush.msra.mxu0 0.0
  %434 = vmatpush.msra.mxu0 0.0
  %435 = vmatpush.msra.mxu0 0.0
  %436 = vmatpush.msra.mxu0 0.0
  %437 = vmatpush.msra.mxu0 0.0
  %438 = vmatpush.msra.mxu0 0.0
  %439 = vmatpush.msra.mxu0 %v120
  %440 = vmatpush.msra.mxu0 %v119
  %441 = vmatmul.f32.gmra.mxu0 %v363
  %v442 = vpop.f32.mrf.mxu0
  %v443 = vadd.f32 0.0, %v442
  %444 = vdwg.mxu0
  %v445 = vadd.f32 %v424, %v443
  %v446 = vxor.u32 %v445, 2147483648
  %v447 = vmul.f32 %v446, 1.442695
  %v448 = vpow.pop %v447
  %v449 = vadd.f32 %v448, 1.0
  %v450 = vrcp.pop %v449
  %v451 = vmul.f32 %v449, %v450
  %v452 = vsub.f32 1.0, %v451
  %v453 = vmul.f32 %v450, %v452
  %v454 = vadd.f32 %v450, %v453
  %vm455 = vweird.f32 %v449
  %vm456 = vweird.f32 %v450
  %vm457 = vmor %vm455, %vm456
  %v458 = vsel %vm457, %v450, %v454
  %v459 = vand.u32 2147483647, %v449
  %vm460 = vcmp.eq.f32.partialorder %v459, 8.507059e+37
  %v461 = vand.u32 %v449, 2147483648
  %v462 = vor.u32 1.1754944e-38, %v461
  %v463 = vsel %vm460, %v462, %v458
  %v464 = vmul.f32 1.0, %v463
  %v465 = vtanh.pop %v445
  %v466 = vmul.f32 %v464, %v328
  %468 = vrot.lane.b32.xlu0 %v465, 32
  %v469 = vpop.permute.xlu0 %468
  %v471 = vmul.f32 %v464, %v469
  %473 = vrot.lane.b32.xlu0 %v471, 32
  %v474 = vpop.permute.xlu0 %473
  %v476 = vadd.f32 %v466, %v474
  %v477 = vtanh.pop %v476
  %479 = vrot.lane.b32.xlu0 %v477, 32
  %v480 = vpop.permute.xlu0 %479
  %v482 = vmul.f32 %v464, %v480
  %484 = vrot.lane.b32.xlu0 %v422, 64
  %v485 = vpop.permute.xlu0 %484
  %v486 = vsel %vm127, %v485, 0
  %488 = vmatpush.msra.mxu0 0.0
  %489 = vmatpush.msra.mxu0 0.0
  %490 = vmatpush.msra.mxu0 0.0
  %491 = vmatpush.msra.mxu0 0.0
  %492 = vmatpush.msra.mxu0 0.0
  %493 = vmatpush.msra.mxu0 0.0
  %494 = vmatpush.msra.mxu0 0.0
  %495 = vmatpush.msra.mxu0 0.0
  %496 = vmatpush.msra.mxu0 0.0
  %497 = vmatpush.msra.mxu0 0.0
  %498 = vmatpush.msra.mxu0 0.0
  %499 = vmatpush.msra.mxu0 0.0
  %500 = vmatpush.msra.mxu0 0.0
  %501 = vmatpush.msra.mxu0 0.0
  %502 = vmatpush.msra.mxu0 %v124
  %503 = vmatpush.msra.mxu0 %v123
  %504 = vmatmul.f32.gmra.mxu0 %v486
  %v505 = vpop.f32.mrf.mxu0
  %v506 = vadd.f32 0.0, %v505
  %507 = vdwg.mxu0
  %509 = vrot.lane.b32.xlu0 %v482, 64
  %v510 = vpop.permute.xlu0 %509
  %v511 = vsel %vm127, %v510, 0
  %513 = vmatpush.msra.mxu0 0.0
  %514 = vmatpush.msra.mxu0 0.0
  %515 = vmatpush.msra.mxu0 0.0
  %516 = vmatpush.msra.mxu0 0.0
  %517 = vmatpush.msra.mxu0 0.0
  %518 = vmatpush.msra.mxu0 0.0
  %519 = vmatpush.msra.mxu0 0.0
  %520 = vmatpush.msra.mxu0 0.0
  %521 = vmatpush.msra.mxu0 0.0
  %522 = vmatpush.msra.mxu0 0.0
  %523 = vmatpush.msra.mxu0 0.0
  %524 = vmatpush.msra.mxu0 0.0
  %525 = vmatpush.msra.mxu0 0.0
  %526 = vmatpush.msra.mxu0 0.0
  %527 = vmatpush.msra.mxu0 %v122
  %528 = vmatpush.msra.mxu0 %v121
  %529 = vmatmul.f32.gmra.mxu0 %v511
  %v530 = vpop.f32.mrf.mxu0
  %v531 = vadd.f32 %v506, %v530
  %532 = vdwg.mxu0
  %v533 = vadd.f32 %v531, %v235
  %v534 = vxor.u32 %v533, 2147483648
  %v535 = vmul.f32 %v534, 1.442695
  %v536 = vpow.pop %v535
  %v537 = vadd.f32 %v536, 1.0
  %v538 = vrcp.pop %v537
  %v539 = vmul.f32 %v537, %v538
  %v540 = vsub.f32 1.0, %v539
  %v541 = vmul.f32 %v538, %v540
  %v542 = vadd.f32 %v538, %v541
  %vm543 = vweird.f32 %v537
  %vm544 = vweird.f32 %v538
  %vm545 = vmor %vm543, %vm544
  %v546 = vsel %vm545, %v538, %v542
  %v547 = vand.u32 2147483647, %v537
  %vm548 = vcmp.eq.f32.partialorder %v547, 8.507059e+37
  %v549 = vand.u32 %v537, 2147483648
  %v550 = vor.u32 1.1754944e-38, %v549
  %v551 = vsel %vm548, %v550, %v546
  %v552 = vmul.f32 1.0, %v551
  %v553 = vtanh.pop %v533
  %v554 = vmul.f32 %v552, %v416
  %556 = vrot.lane.b32.xlu0 %v553, 32
  %v557 = vpop.permute.xlu0 %556
  %v559 = vmul.f32 %v552, %v557
  %561 = vrot.lane.b32.xlu0 %v559, 32
  %v562 = vpop.permute.xlu0 %561
  %v564 = vadd.f32 %v554, %v562
  %v565 = vtanh.pop %v564
  %567 = vrot.lane.b32.xlu0 %v565, 32
  %v568 = vpop.permute.xlu0 %567
  %v570 = vmul.f32 %v552, %v568
  %s571 = scalar_lea.vmem [#allocation2], 24
  %v572 = vld [vmem:[%s571] sm:$0xff]
  %573 = vmatpush.msra.mxu0 0.0
  %574 = vmatpush.msra.mxu0 0.0
  %575 = vmatpush.msra.mxu0 0.0
  %576 = vmatpush.msra.mxu0 0.0
  %577 = vmatpush.msra.mxu0 0.0
  %578 = vmatpush.msra.mxu0 0.0
  %579 = vmatpush.msra.mxu0 0.0
  %580 = vmatpush.msra.mxu0 0.0
  %581 = vmatpush.msra.mxu0 0.0
  %582 = vmatpush.msra.mxu0 0.0
  %583 = vmatpush.msra.mxu0 0.0
  %584 = vmatpush.msra.mxu0 0.0
  %585 = vmatpush.msra.mxu0 0.0
  %586 = vmatpush.msra.mxu0 0.0
  %587 = vmatpush.msra.mxu0 %v120
  %588 = vmatpush.msra.mxu0 %v119
  %589 = vmatmul.f32.gmra.mxu0 %v511
  %v590 = vpop.f32.mrf.mxu0
  %v591 = vadd.f32 0.0, %v590
  %592 = vdwg.mxu0
  %v593 = vadd.f32 %v572, %v591
  %v594 = vxor.u32 %v593, 2147483648
  %v595 = vmul.f32 %v594, 1.442695
  %v596 = vpow.pop %v595
  %v597 = vadd.f32 %v596, 1.0
  %v598 = vrcp.pop %v597
  %v599 = vmul.f32 %v597, %v598
  %v600 = vsub.f32 1.0, %v599
  %v601 = vmul.f32 %v598, %v600
  %v602 = vadd.f32 %v598, %v601
  %vm603 = vweird.f32 %v597
  %vm604 = vweird.f32 %v598
  %vm605 = vmor %vm603, %vm604
  %v606 = vsel %vm605, %v598, %v602
  %v607 = vand.u32 2147483647, %v597
  %vm608 = vcmp.eq.f32.partialorder %v607, 8.507059e+37
  %v609 = vand.u32 %v597, 2147483648
  %v610 = vor.u32 1.1754944e-38, %v609
  %v611 = vsel %vm608, %v610, %v606
  %v612 = vmul.f32 1.0, %v611
  %v613 = vtanh.pop %v593
  %v614 = vmul.f32 %v612, %v476
  %616 = vrot.lane.b32.xlu0 %v613, 32
  %v617 = vpop.permute.xlu0 %616
  %v619 = vmul.f32 %v612, %v617
  %621 = vrot.lane.b32.xlu0 %v619, 32
  %v622 = vpop.permute.xlu0 %621
  %v624 = vadd.f32 %v614, %v622
  %v625 = vtanh.pop %v624
  %627 = vrot.lane.b32.xlu0 %v625, 32
  %v628 = vpop.permute.xlu0 %627
  %v630 = vmul.f32 %v612, %v628
  %632 = vrot.lane.b32.xlu0 %v570, 64
  %v633 = vpop.permute.xlu0 %632
  %v634 = vsel %vm127, %v633, 0
  %636 = vmatpush.msra.mxu0 0.0
  %637 = vmatpush.msra.mxu0 0.0
  %638 = vmatpush.msra.mxu0 0.0
  %639 = vmatpush.msra.mxu0 0.0
  %640 = vmatpush.msra.mxu0 0.0
  %641 = vmatpush.msra.mxu0 0.0
  %642 = vmatpush.msra.mxu0 0.0
  %643 = vmatpush.msra.mxu0 0.0
  %644 = vmatpush.msra.mxu0 0.0
  %645 = vmatpush.msra.mxu0 0.0
  %646 = vmatpush.msra.mxu0 0.0
  %647 = vmatpush.msra.mxu0 0.0
  %648 = vmatpush.msra.mxu0 0.0
  %649 = vmatpush.msra.mxu0 0.0
  %650 = vmatpush.msra.mxu0 %v124
  %651 = vmatpush.msra.mxu0 %v123
  %652 = vmatmul.f32.gmra.mxu0 %v634
  %v653 = vpop.f32.mrf.mxu0
  %v654 = vadd.f32 0.0, %v653
  %655 = vdwg.mxu0
  %657 = vrot.lane.b32.xlu0 %v630, 64
  %v658 = vpop.permute.xlu0 %657
  %v659 = vsel %vm127, %v658, 0
  %661 = vmatpush.msra.mxu0 0.0
  %662 = vmatpush.msra.mxu0 0.0
  %663 = vmatpush.msra.mxu0 0.0
  %664 = vmatpush.msra.mxu0 0.0
  %665 = vmatpush.msra.mxu0 0.0
  %666 = vmatpush.msra.mxu0 0.0
  %667 = vmatpush.msra.mxu0 0.0
  %668 = vmatpush.msra.mxu0 0.0
  %669 = vmatpush.msra.mxu0 0.0
  %670 = vmatpush.msra.mxu0 0.0
  %671 = vmatpush.msra.mxu0 0.0
  %672 = vmatpush.msra.mxu0 0.0
  %673 = vmatpush.msra.mxu0 0.0
  %674 = vmatpush.msra.mxu0 0.0
  %675 = vmatpush.msra.mxu0 %v122
  %676 = vmatpush.msra.mxu0 %v121
  %677 = vmatmul.f32.gmra.mxu0 %v659
  %v678 = vpop.f32.mrf.mxu0
  %v679 = vadd.f32 %v654, %v678
  %680 = vdwg.mxu0
  %v681 = vadd.f32 %v679, %v235
  %v682 = vxor.u32 %v681, 2147483648
  %v683 = vmul.f32 %v682, 1.442695
  %v684 = vpow.pop %v683
  %v685 = vadd.f32 %v684, 1.0
  %v686 = vrcp.pop %v685
  %v687 = vmul.f32 %v685, %v686
  %v688 = vsub.f32 1.0, %v687
  %v689 = vmul.f32 %v686, %v688
  %v690 = vadd.f32 %v686, %v689
  %vm691 = vweird.f32 %v685
  %vm692 = vweird.f32 %v686
  %vm693 = vmor %vm691, %vm692
  %v694 = vsel %vm693, %v686, %v690
  %v695 = vand.u32 2147483647, %v685
  %vm696 = vcmp.eq.f32.partialorder %v695, 8.507059e+37
  %v697 = vand.u32 %v685, 2147483648
  %v698 = vor.u32 1.1754944e-38, %v697
  %v699 = vsel %vm696, %v698, %v694
  %v700 = vmul.f32 1.0, %v699
  %v701 = vtanh.pop %v681
  %v702 = vmul.f32 %v700, %v564
  %704 = vrot.lane.b32.xlu0 %v701, 32
  %v705 = vpop.permute.xlu0 %704
  %v707 = vmul.f32 %v700, %v705
  %709 = vrot.lane.b32.xlu0 %v707, 32
  %v710 = vpop.permute.xlu0 %709
  %v712 = vadd.f32 %v702, %v710
  %v713 = vtanh.pop %v712
  %715 = vrot.lane.b32.xlu0 %v713, 32
  %v716 = vpop.permute.xlu0 %715
  %v718 = vmul.f32 %v700, %v716
  %s719 = scalar_lea.vmem [#allocation2], 32
  %v720 = vld [vmem:[%s719] sm:$0xff]
  %721 = vmatpush.msra.mxu0 0.0
  %722 = vmatpush.msra.mxu0 0.0
  %723 = vmatpush.msra.mxu0 0.0
  %724 = vmatpush.msra.mxu0 0.0
  %725 = vmatpush.msra.mxu0 0.0
  %726 = vmatpush.msra.mxu0 0.0
  %727 = vmatpush.msra.mxu0 0.0
  %728 = vmatpush.msra.mxu0 0.0
  %729 = vmatpush.msra.mxu0 0.0
  %730 = vmatpush.msra.mxu0 0.0
  %731 = vmatpush.msra.mxu0 0.0
  %732 = vmatpush.msra.mxu0 0.0
  %733 = vmatpush.msra.mxu0 0.0
  %734 = vmatpush.msra.mxu0 0.0
  %735 = vmatpush.msra.mxu0 %v120
  %736 = vmatpush.msra.mxu0 %v119
  %737 = vmatmul.f32.gmra.mxu0 %v659
  %v738 = vpop.f32.mrf.mxu0
  %v739 = vadd.f32 0.0, %v738
  %740 = vdwg.mxu0
  %v741 = vadd.f32 %v720, %v739
  %v742 = vxor.u32 %v741, 2147483648
  %v743 = vmul.f32 %v742, 1.442695
  %v744 = vpow.pop %v743
  %v745 = vadd.f32 %v744, 1.0
  %v746 = vrcp.pop %v745
  %v747 = vmul.f32 %v745, %v746
  %v748 = vsub.f32 1.0, %v747
  %v749 = vmul.f32 %v746, %v748
  %v750 = vadd.f32 %v746, %v749
  %vm751 = vweird.f32 %v745
  %vm752 = vweird.f32 %v746
  %vm753 = vmor %vm751, %vm752
  %v754 = vsel %vm753, %v746, %v750
  %v755 = vand.u32 2147483647, %v745
  %vm756 = vcmp.eq.f32.partialorder %v755, 8.507059e+37
  %v757 = vand.u32 %v745, 2147483648
  %v758 = vor.u32 1.1754944e-38, %v757
  %v759 = vsel %vm756, %v758, %v754
  %v760 = vmul.f32 1.0, %v759
  %v761 = vtanh.pop %v741
  %v762 = vmul.f32 %v760, %v624
  %764 = vrot.lane.b32.xlu0 %v761, 32
  %v765 = vpop.permute.xlu0 %764
  %v767 = vmul.f32 %v760, %v765
  %769 = vrot.lane.b32.xlu0 %v767, 32
  %v770 = vpop.permute.xlu0 %769
  %v772 = vadd.f32 %v762, %v770
  %v773 = vtanh.pop %v772
  %775 = vrot.lane.b32.xlu0 %v773, 32
  %v776 = vpop.permute.xlu0 %775
  %v778 = vmul.f32 %v760, %v776
  %780 = vrot.lane.b32.xlu0 %v718, 64
  %v781 = vpop.permute.xlu0 %780
  %v782 = vsel %vm127, %v781, 0
  %784 = vmatpush.msra.mxu0 0.0
  %785 = vmatpush.msra.mxu0 0.0
  %786 = vmatpush.msra.mxu0 0.0
  %787 = vmatpush.msra.mxu0 0.0
  %788 = vmatpush.msra.mxu0 0.0
  %789 = vmatpush.msra.mxu0 0.0
  %790 = vmatpush.msra.mxu0 0.0
  %791 = vmatpush.msra.mxu0 0.0
  %792 = vmatpush.msra.mxu0 0.0
  %793 = vmatpush.msra.mxu0 0.0
  %794 = vmatpush.msra.mxu0 0.0
  %795 = vmatpush.msra.mxu0 0.0
  %796 = vmatpush.msra.mxu0 0.0
  %797 = vmatpush.msra.mxu0 0.0
  %798 = vmatpush.msra.mxu0 %v124
  %799 = vmatpush.msra.mxu0 %v123
  %800 = vmatmul.f32.gmra.mxu0 %v782
  %v801 = vpop.f32.mrf.mxu0
  %v802 = vadd.f32 0.0, %v801
  %803 = vdwg.mxu0
  %805 = vrot.lane.b32.xlu0 %v778, 64
  %v806 = vpop.permute.xlu0 %805
  %v807 = vsel %vm127, %v806, 0
  %809 = vmatpush.msra.mxu0 0.0
  %810 = vmatpush.msra.mxu0 0.0
  %811 = vmatpush.msra.mxu0 0.0
  %812 = vmatpush.msra.mxu0 0.0
  %813 = vmatpush.msra.mxu0 0.0
  %814 = vmatpush.msra.mxu0 0.0
  %815 = vmatpush.msra.mxu0 0.0
  %816 = vmatpush.msra.mxu0 0.0
  %817 = vmatpush.msra.mxu0 0.0
  %818 = vmatpush.msra.mxu0 0.0
  %819 = vmatpush.msra.mxu0 0.0
  %820 = vmatpush.msra.mxu0 0.0
  %821 = vmatpush.msra.mxu0 0.0
  %822 = vmatpush.msra.mxu0 0.0
  %823 = vmatpush.msra.mxu0 %v122
  %824 = vmatpush.msra.mxu0 %v121
  %825 = vmatmul.f32.gmra.mxu0 %v807
  %v826 = vpop.f32.mrf.mxu0
  %v827 = vadd.f32 %v802, %v826
  %828 = vdwg.mxu0
  %v829 = vadd.f32 %v827, %v235
  %v830 = vxor.u32 %v829, 2147483648
  %v831 = vmul.f32 %v830, 1.442695
  %v832 = vpow.pop %v831
  %v833 = vadd.f32 %v832, 1.0
  %v834 = vrcp.pop %v833
  %v835 = vmul.f32 %v833, %v834
  %v836 = vsub.f32 1.0, %v835
  %v837 = vmul.f32 %v834, %v836
  %v838 = vadd.f32 %v834, %v837
  %vm839 = vweird.f32 %v833
  %vm840 = vweird.f32 %v834
  %vm841 = vmor %vm839, %vm840
  %v842 = vsel %vm841, %v834, %v838
  %v843 = vand.u32 2147483647, %v833
  %vm844 = vcmp.eq.f32.partialorder %v843, 8.507059e+37
  %v845 = vand.u32 %v833, 2147483648
  %v846 = vor.u32 1.1754944e-38, %v845
  %v847 = vsel %vm844, %v846, %v842
  %v848 = vmul.f32 1.0, %v847
  %v849 = vtanh.pop %v829
  %v850 = vmul.f32 %v848, %v712
  %852 = vrot.lane.b32.xlu0 %v849, 32
  %v853 = vpop.permute.xlu0 %852
  %v855 = vmul.f32 %v848, %v853
  %857 = vrot.lane.b32.xlu0 %v855, 32
  %v858 = vpop.permute.xlu0 %857
  %v860 = vadd.f32 %v850, %v858
  %v861 = vtanh.pop %v860
  %863 = vrot.lane.b32.xlu0 %v861, 32
  %v864 = vpop.permute.xlu0 %863
  %v866 = vmul.f32 %v848, %v864
  %s867 = scalar_lea.vmem [#allocation2], 40
  %v868 = vld [vmem:[%s867] sm:$0xff]
  %869 = vmatpush.msra.mxu0 0.0
  %870 = vmatpush.msra.mxu0 0.0
  %871 = vmatpush.msra.mxu0 0.0
  %872 = vmatpush.msra.mxu0 0.0
  %873 = vmatpush.msra.mxu0 0.0
  %874 = vmatpush.msra.mxu0 0.0
  %875 = vmatpush.msra.mxu0 0.0
  %876 = vmatpush.msra.mxu0 0.0
  %877 = vmatpush.msra.mxu0 0.0
  %878 = vmatpush.msra.mxu0 0.0
  %879 = vmatpush.msra.mxu0 0.0
  %880 = vmatpush.msra.mxu0 0.0
  %881 = vmatpush.msra.mxu0 0.0
  %882 = vmatpush.msra.mxu0 0.0
  %883 = vmatpush.msra.mxu0 %v120
  %884 = vmatpush.msra.mxu0 %v119
  %885 = vmatmul.f32.gmra.mxu0 %v807
  %v886 = vpop.f32.mrf.mxu0
  %v887 = vadd.f32 0.0, %v886
  %888 = vdwg.mxu0
  %v889 = vadd.f32 %v868, %v887
  %v890 = vxor.u32 %v889, 2147483648
  %v891 = vmul.f32 %v890, 1.442695
  %v892 = vpow.pop %v891
  %v893 = vadd.f32 %v892, 1.0
  %v894 = vrcp.pop %v893
  %v895 = vmul.f32 %v893, %v894
  %v896 = vsub.f32 1.0, %v895
  %v897 = vmul.f32 %v894, %v896
  %v898 = vadd.f32 %v894, %v897
  %vm899 = vweird.f32 %v893
  %vm900 = vweird.f32 %v894
  %vm901 = vmor %vm899, %vm900
  %v902 = vsel %vm901, %v894, %v898
  %v903 = vand.u32 2147483647, %v893
  %vm904 = vcmp.eq.f32.partialorder %v903, 8.507059e+37
  %v905 = vand.u32 %v893, 2147483648
  %v906 = vor.u32 1.1754944e-38, %v905
  %v907 = vsel %vm904, %v906, %v902
  %v908 = vmul.f32 1.0, %v907
  %v909 = vtanh.pop %v889
  %v910 = vmul.f32 %v908, %v772
  %912 = vrot.lane.b32.xlu0 %v909, 32
  %v913 = vpop.permute.xlu0 %912
  %v915 = vmul.f32 %v908, %v913
  %917 = vrot.lane.b32.xlu0 %v915, 32
  %v918 = vpop.permute.xlu0 %917
  %v920 = vadd.f32 %v910, %v918
  %v921 = vtanh.pop %v920
  %923 = vrot.lane.b32.xlu0 %v921, 32
  %v924 = vpop.permute.xlu0 %923
  %v926 = vmul.f32 %v908, %v924
  %928 = vrot.lane.b32.xlu0 %v866, 64
  %v929 = vpop.permute.xlu0 %928
  %v930 = vsel %vm127, %v929, 0
  %932 = vmatpush.msra.mxu0 0.0
  %933 = vmatpush.msra.mxu0 0.0
  %934 = vmatpush.msra.mxu0 0.0
  %935 = vmatpush.msra.mxu0 0.0
  %936 = vmatpush.msra.mxu0 0.0
  %937 = vmatpush.msra.mxu0 0.0
  %938 = vmatpush.msra.mxu0 0.0
  %939 = vmatpush.msra.mxu0 0.0
  %940 = vmatpush.msra.mxu0 0.0
  %941 = vmatpush.msra.mxu0 0.0
  %942 = vmatpush.msra.mxu0 0.0
  %943 = vmatpush.msra.mxu0 0.0
  %944 = vmatpush.msra.mxu0 0.0
  %945 = vmatpush.msra.mxu0 0.0
  %946 = vmatpush.msra.mxu0 %v124
  %947 = vmatpush.msra.mxu0 %v123
  %948 = vmatmul.f32.gmra.mxu0 %v930
  %v949 = vpop.f32.mrf.mxu0
  %v950 = vadd.f32 0.0, %v949
  %951 = vdwg.mxu0
  %953 = vrot.lane.b32.xlu0 %v926, 64
  %v954 = vpop.permute.xlu0 %953
  %v955 = vsel %vm127, %v954, 0
  %957 = vmatpush.msra.mxu0 0.0
  %958 = vmatpush.msra.mxu0 0.0
  %959 = vmatpush.msra.mxu0 0.0
  %960 = vmatpush.msra.mxu0 0.0
  %961 = vmatpush.msra.mxu0 0.0
  %962 = vmatpush.msra.mxu0 0.0
  %963 = vmatpush.msra.mxu0 0.0
  %964 = vmatpush.msra.mxu0 0.0
  %965 = vmatpush.msra.mxu0 0.0
  %966 = vmatpush.msra.mxu0 0.0
  %967 = vmatpush.msra.mxu0 0.0
  %968 = vmatpush.msra.mxu0 0.0
  %969 = vmatpush.msra.mxu0 0.0
  %970 = vmatpush.msra.mxu0 0.0
  %971 = vmatpush.msra.mxu0 %v122
  %972 = vmatpush.msra.mxu0 %v121
  %973 = vmatmul.f32.gmra.mxu0 %v955
  %v974 = vpop.f32.mrf.mxu0
  %v975 = vadd.f32 %v950, %v974
  %976 = vdwg.mxu0
  %v977 = vadd.f32 %v975, %v235
  %v978 = vxor.u32 %v977, 2147483648
  %v979 = vmul.f32 %v978, 1.442695
  %v980 = vpow.pop %v979
  %v981 = vadd.f32 %v980, 1.0
  %v982 = vrcp.pop %v981
  %v983 = vmul.f32 %v981, %v982
  %v984 = vsub.f32 1.0, %v983
  %v985 = vmul.f32 %v982, %v984
  %v986 = vadd.f32 %v982, %v985
  %vm987 = vweird.f32 %v981
  %vm988 = vweird.f32 %v982
  %vm989 = vmor %vm987, %vm988
  %v990 = vsel %vm989, %v982, %v986
  %v991 = vand.u32 2147483647, %v981
  %vm992 = vcmp.eq.f32.partialorder %v991, 8.507059e+37
  %v993 = vand.u32 %v981, 2147483648
  %v994 = vor.u32 1.1754944e-38, %v993
  %v995 = vsel %vm992, %v994, %v990
  %v996 = vmul.f32 1.0, %v995
  %v997 = vtanh.pop %v977
  %v998 = vmul.f32 %v996, %v860
  %1000 = vrot.lane.b32.xlu0 %v997, 32
  %v1001 = vpop.permute.xlu0 %1000
  %v1003 = vmul.f32 %v996, %v1001
  %1005 = vrot.lane.b32.xlu0 %v1003, 32
  %v1006 = vpop.permute.xlu0 %1005
  %v1008 = vadd.f32 %v998, %v1006
  %v1009 = vtanh.pop %v1008
  %1011 = vrot.lane.b32.xlu0 %v1009, 32
  %v1012 = vpop.permute.xlu0 %1011
  %v1014 = vmul.f32 %v996, %v1012
  %s1015 = scalar_lea.vmem [#allocation2], 48
  %v1016 = vld [vmem:[%s1015] sm:$0xff]
  %1017 = vmatpush.msra.mxu0 0.0
  %1018 = vmatpush.msra.mxu0 0.0
  %1019 = vmatpush.msra.mxu0 0.0
  %1020 = vmatpush.msra.mxu0 0.0
  %1021 = vmatpush.msra.mxu0 0.0
  %1022 = vmatpush.msra.mxu0 0.0
  %1023 = vmatpush.msra.mxu0 0.0
  %1024 = vmatpush.msra.mxu0 0.0
  %1025 = vmatpush.msra.mxu0 0.0
  %1026 = vmatpush.msra.mxu0 0.0
  %1027 = vmatpush.msra.mxu0 0.0
  %1028 = vmatpush.msra.mxu0 0.0
  %1029 = vmatpush.msra.mxu0 0.0
  %1030 = vmatpush.msra.mxu0 0.0
  %1031 = vmatpush.msra.mxu0 %v120
  %1032 = vmatpush.msra.mxu0 %v119
  %1033 = vmatmul.f32.gmra.mxu0 %v955
  %v1034 = vpop.f32.mrf.mxu0
  %v1035 = vadd.f32 0.0, %v1034
  %1036 = vdwg.mxu0
  %v1037 = vadd.f32 %v1016, %v1035
  %v1038 = vxor.u32 %v1037, 2147483648
  %v1039 = vmul.f32 %v1038, 1.442695
  %v1040 = vpow.pop %v1039
  %v1041 = vadd.f32 %v1040, 1.0
  %v1042 = vrcp.pop %v1041
  %v1043 = vmul.f32 %v1041, %v1042
  %v1044 = vsub.f32 1.0, %v1043
  %v1045 = vmul.f32 %v1042, %v1044
  %v1046 = vadd.f32 %v1042, %v1045
  %vm1047 = vweird.f32 %v1041
  %vm1048 = vweird.f32 %v1042
  %vm1049 = vmor %vm1047, %vm1048
  %v1050 = vsel %vm1049, %v1042, %v1046
  %v1051 = vand.u32 2147483647, %v1041
  %vm1052 = vcmp.eq.f32.partialorder %v1051, 8.507059e+37
  %v1053 = vand.u32 %v1041, 2147483648
  %v1054 = vor.u32 1.1754944e-38, %v1053
  %v1055 = vsel %vm1052, %v1054, %v1050
  %v1056 = vmul.f32 1.0, %v1055
  %v1057 = vtanh.pop %v1037
  %v1058 = vmul.f32 %v1056, %v920
  %1060 = vrot.lane.b32.xlu0 %v1057, 32
  %v1061 = vpop.permute.xlu0 %1060
  %v1063 = vmul.f32 %v1056, %v1061
  %1065 = vrot.lane.b32.xlu0 %v1063, 32
  %v1066 = vpop.permute.xlu0 %1065
  %v1068 = vadd.f32 %v1058, %v1066
  %v1069 = vtanh.pop %v1068
  %1071 = vrot.lane.b32.xlu0 %v1069, 32
  %v1072 = vpop.permute.xlu0 %1071
  %v1074 = vmul.f32 %v1056, %v1072
  %1076 = vrot.lane.b32.xlu0 %v1014, 64
  %v1077 = vpop.permute.xlu0 %1076
  %v1078 = vsel %vm127, %v1077, 0
  %1080 = vmatpush.msra.mxu0 0.0
  %1081 = vmatpush.msra.mxu0 0.0
  %1082 = vmatpush.msra.mxu0 0.0
  %1083 = vmatpush.msra.mxu0 0.0
  %1084 = vmatpush.msra.mxu0 0.0
  %1085 = vmatpush.msra.mxu0 0.0
  %1086 = vmatpush.msra.mxu0 0.0
  %1087 = vmatpush.msra.mxu0 0.0
  %1088 = vmatpush.msra.mxu0 0.0
  %1089 = vmatpush.msra.mxu0 0.0
  %1090 = vmatpush.msra.mxu0 0.0
  %1091 = vmatpush.msra.mxu0 0.0
  %1092 = vmatpush.msra.mxu0 0.0
  %1093 = vmatpush.msra.mxu0 0.0
  %1094 = vmatpush.msra.mxu0 %v124
  %1095 = vmatpush.msra.mxu0 %v123
  %1096 = vmatmul.f32.gmra.mxu0 %v1078
  %v1097 = vpop.f32.mrf.mxu0
  %v1098 = vadd.f32 0.0, %v1097
  %1099 = vdwg.mxu0
  %1101 = vrot.lane.b32.xlu0 %v1074, 64
  %v1102 = vpop.permute.xlu0 %1101
  %v1103 = vsel %vm127, %v1102, 0
  %1105 = vmatpush.msra.mxu0 0.0
  %1106 = vmatpush.msra.mxu0 0.0
  %1107 = vmatpush.msra.mxu0 0.0
  %1108 = vmatpush.msra.mxu0 0.0
  %1109 = vmatpush.msra.mxu0 0.0
  %1110 = vmatpush.msra.mxu0 0.0
  %1111 = vmatpush.msra.mxu0 0.0
  %1112 = vmatpush.msra.mxu0 0.0
  %1113 = vmatpush.msra.mxu0 0.0
  %1114 = vmatpush.msra.mxu0 0.0
  %1115 = vmatpush.msra.mxu0 0.0
  %1116 = vmatpush.msra.mxu0 0.0
  %1117 = vmatpush.msra.mxu0 0.0
  %1118 = vmatpush.msra.mxu0 0.0
  %1119 = vmatpush.msra.mxu0 %v122
  %1120 = vmatpush.msra.mxu0 %v121
  %1121 = vmatmul.f32.gmra.mxu0 %v1103
  %v1122 = vpop.f32.mrf.mxu0
  %v1123 = vadd.f32 %v1098, %v1122
  %1124 = vdwg.mxu0
  %v1125 = vadd.f32 %v1123, %v235
  %v1126 = vxor.u32 %v1125, 2147483648
  %v1127 = vmul.f32 %v1126, 1.442695
  %v1128 = vpow.pop %v1127
  %v1129 = vadd.f32 %v1128, 1.0
  %v1130 = vrcp.pop %v1129
  %v1131 = vmul.f32 %v1129, %v1130
  %v1132 = vsub.f32 1.0, %v1131
  %v1133 = vmul.f32 %v1130, %v1132
  %v1134 = vadd.f32 %v1130, %v1133
  %vm1135 = vweird.f32 %v1129
  %vm1136 = vweird.f32 %v1130
  %vm1137 = vmor %vm1135, %vm1136
  %v1138 = vsel %vm1137, %v1130, %v1134
  %v1139 = vand.u32 2147483647, %v1129
  %vm1140 = vcmp.eq.f32.partialorder %v1139, 8.507059e+37
  %v1141 = vand.u32 %v1129, 2147483648
  %v1142 = vor.u32 1.1754944e-38, %v1141
  %v1143 = vsel %vm1140, %v1142, %v1138
  %v1144 = vmul.f32 1.0, %v1143
  %v1145 = vtanh.pop %v1125
  %v1146 = vmul.f32 %v1144, %v1008
  %1148 = vrot.lane.b32.xlu0 %v1145, 32
  %v1149 = vpop.permute.xlu0 %1148
  %v1151 = vmul.f32 %v1144, %v1149
  %1153 = vrot.lane.b32.xlu0 %v1151, 32
  %v1154 = vpop.permute.xlu0 %1153
  %v1156 = vadd.f32 %v1146, %v1154
  %v1157 = vtanh.pop %v1156
  %1159 = vrot.lane.b32.xlu0 %v1157, 32
  %v1160 = vpop.permute.xlu0 %1159
  %v1162 = vmul.f32 %v1144, %v1160
  %s1163 = scalar_lea.vmem [#allocation2], 56
  %v1164 = vld [vmem:[%s1163] sm:$0xff]
  %1165 = vmatpush.msra.mxu0 0.0
  %1166 = vmatpush.msra.mxu0 0.0
  %1167 = vmatpush.msra.mxu0 0.0
  %1168 = vmatpush.msra.mxu0 0.0
  %1169 = vmatpush.msra.mxu0 0.0
  %1170 = vmatpush.msra.mxu0 0.0
  %1171 = vmatpush.msra.mxu0 0.0
  %1172 = vmatpush.msra.mxu0 0.0
  %1173 = vmatpush.msra.mxu0 0.0
  %1174 = vmatpush.msra.mxu0 0.0
  %1175 = vmatpush.msra.mxu0 0.0
  %1176 = vmatpush.msra.mxu0 0.0
  %1177 = vmatpush.msra.mxu0 0.0
  %1178 = vmatpush.msra.mxu0 0.0
  %1179 = vmatpush.msra.mxu0 %v120
  %1180 = vmatpush.msra.mxu0 %v119
  %1181 = vmatmul.f32.gmra.mxu0 %v1103
  %v1182 = vpop.f32.mrf.mxu0
  %v1183 = vadd.f32 0.0, %v1182
  %1184 = vdwg.mxu0
  %v1185 = vadd.f32 %v1164, %v1183
  %v1186 = vxor.u32 %v1185, 2147483648
  %v1187 = vmul.f32 %v1186, 1.442695
  %v1188 = vpow.pop %v1187
  %v1189 = vadd.f32 %v1188, 1.0
  %v1190 = vrcp.pop %v1189
  %v1191 = vmul.f32 %v1189, %v1190
  %v1192 = vsub.f32 1.0, %v1191
  %v1193 = vmul.f32 %v1190, %v1192
  %v1194 = vadd.f32 %v1190, %v1193
  %vm1195 = vweird.f32 %v1189
  %vm1196 = vweird.f32 %v1190
  %vm1197 = vmor %vm1195, %vm1196
  %v1198 = vsel %vm1197, %v1190, %v1194
  %v1199 = vand.u32 2147483647, %v1189
  %vm1200 = vcmp.eq.f32.partialorder %v1199, 8.507059e+37
  %v1201 = vand.u32 %v1189, 2147483648
  %v1202 = vor.u32 1.1754944e-38, %v1201
  %v1203 = vsel %vm1200, %v1202, %v1198
  %v1204 = vmul.f32 1.0, %v1203
  %v1205 = vtanh.pop %v1185
  %v1206 = vmul.f32 %v1204, %v1068
  %1208 = vrot.lane.b32.xlu0 %v1205, 32
  %v1209 = vpop.permute.xlu0 %1208
  %v1211 = vmul.f32 %v1204, %v1209
  %1213 = vrot.lane.b32.xlu0 %v1211, 32
  %v1214 = vpop.permute.xlu0 %1213
  %v1216 = vadd.f32 %v1206, %v1214
  %v1217 = vtanh.pop %v1216
  %1219 = vrot.lane.b32.xlu0 %v1217, 32
  %v1220 = vpop.permute.xlu0 %1219
  %v1222 = vmul.f32 %v1204, %v1220
  %1224 = vrot.lane.b32.xlu0 %v1162, 64
  %v1225 = vpop.permute.xlu0 %1224
  %v1226 = vsel %vm127, %v1225, 0
  %1228 = vmatpush.msra.mxu0 0.0
  %1229 = vmatpush.msra.mxu0 0.0
  %1230 = vmatpush.msra.mxu0 0.0
  %1231 = vmatpush.msra.mxu0 0.0
  %1232 = vmatpush.msra.mxu0 0.0
  %1233 = vmatpush.msra.mxu0 0.0
  %1234 = vmatpush.msra.mxu0 0.0
  %1235 = vmatpush.msra.mxu0 0.0
  %1236 = vmatpush.msra.mxu0 0.0
  %1237 = vmatpush.msra.mxu0 0.0
  %1238 = vmatpush.msra.mxu0 0.0
  %1239 = vmatpush.msra.mxu0 0.0
  %1240 = vmatpush.msra.mxu0 0.0
  %1241 = vmatpush.msra.mxu0 0.0
  %1242 = vmatpush.msra.mxu0 %v124
  %1243 = vmatpush.msra.mxu0 %v123
  %1244 = vmatmul.f32.gmra.mxu0 %v1226
  %v1245 = vpop.f32.mrf.mxu0
  %v1246 = vadd.f32 0.0, %v1245
  %1247 = vdwg.mxu0
  %1249 = vrot.lane.b32.xlu0 %v1222, 64
  %v1250 = vpop.permute.xlu0 %1249
  %v1251 = vsel %vm127, %v1250, 0
  %1253 = vmatpush.msra.mxu0 0.0
  %1254 = vmatpush.msra.mxu0 0.0
  %1255 = vmatpush.msra.mxu0 0.0
  %1256 = vmatpush.msra.mxu0 0.0
  %1257 = vmatpush.msra.mxu0 0.0
  %1258 = vmatpush.msra.mxu0 0.0
  %1259 = vmatpush.msra.mxu0 0.0
  %1260 = vmatpush.msra.mxu0 0.0
  %1261 = vmatpush.msra.mxu0 0.0
  %1262 = vmatpush.msra.mxu0 0.0
  %1263 = vmatpush.msra.mxu0 0.0
  %1264 = vmatpush.msra.mxu0 0.0
  %1265 = vmatpush.msra.mxu0 0.0
  %1266 = vmatpush.msra.mxu0 0.0
  %1267 = vmatpush.msra.mxu0 %v122
  %1268 = vmatpush.msra.mxu0 %v121
  %1269 = vmatmul.f32.gmra.mxu0 %v1251
  %v1270 = vpop.f32.mrf.mxu0
  %v1271 = vadd.f32 %v1246, %v1270
  %1272 = vdwg.mxu0
  %v1273 = vadd.f32 %v1271, %v235
  %v1274 = vxor.u32 %v1273, 2147483648
  %v1275 = vmul.f32 %v1274, 1.442695
  %v1276 = vpow.pop %v1275
  %v1277 = vadd.f32 %v1276, 1.0
  %v1278 = vrcp.pop %v1277
  %v1279 = vmul.f32 %v1277, %v1278
  %v1280 = vsub.f32 1.0, %v1279
  %v1281 = vmul.f32 %v1278, %v1280
  %v1282 = vadd.f32 %v1278, %v1281
  %vm1283 = vweird.f32 %v1277
  %vm1284 = vweird.f32 %v1278
  %vm1285 = vmor %vm1283, %vm1284
  %v1286 = vsel %vm1285, %v1278, %v1282
  %v1287 = vand.u32 2147483647, %v1277
  %vm1288 = vcmp.eq.f32.partialorder %v1287, 8.507059e+37
  %v1289 = vand.u32 %v1277, 2147483648
  %v1290 = vor.u32 1.1754944e-38, %v1289
  %v1291 = vsel %vm1288, %v1290, %v1286
  %v1292 = vmul.f32 1.0, %v1291
  %v1293 = vtanh.pop %v1273
  %v1294 = vmul.f32 %v1292, %v1156
  %1296 = vrot.lane.b32.xlu0 %v1293, 32
  %v1297 = vpop.permute.xlu0 %1296
  %v1299 = vmul.f32 %v1292, %v1297
  %1301 = vrot.lane.b32.xlu0 %v1299, 32
  %v1302 = vpop.permute.xlu0 %1301
  %v1304 = vadd.f32 %v1294, %v1302
  %v1305 = vtanh.pop %v1304
  %1307 = vrot.lane.b32.xlu0 %v1305, 32
  %v1308 = vpop.permute.xlu0 %1307
  %v1310 = vmul.f32 %v1292, %v1308
  %v1311 = vld [vmem:[%s7] sm:$0xff]
  %v1312 = vld [vmem:[%s7 + $0x8] sm:$0xff]
  %v1313 = vld [vmem:[%s8] sm:$0x1]
  %v1315 = vperm.slane %v1313, 0
  %1318 = vrot.lane.b32.xlu0 %v1310, 64
  %v1319 = vpop.permute.xlu0 %1318
  %v1320 = vsel %vm127, %v1319, 0
  %1322 = vmatpush.msra.mxu0 0.0
  %1323 = vmatpush.msra.mxu0 0.0
  %1324 = vmatpush.msra.mxu0 0.0
  %1325 = vmatpush.msra.mxu0 0.0
  %1326 = vmatpush.msra.mxu0 0.0
  %1327 = vmatpush.msra.mxu0 0.0
  %1328 = vmatpush.msra.mxu0 0.0
  %1329 = vmatpush.msra.mxu0 0.0
  %1330 = vmatpush.msra.mxu0 0.0
  %1331 = vmatpush.msra.mxu0 0.0
  %1332 = vmatpush.msra.mxu0 0.0
  %1333 = vmatpush.msra.mxu0 0.0
  %1334 = vmatpush.msra.mxu0 0.0
  %1335 = vmatpush.msra.mxu0 0.0
  %1336 = vmatpush.msra.mxu0 %v1312
  %1337 = vmatpush.msra.mxu0 %v1311
  %1338 = vmatmul.f32.gmra.mxu0 %v1320
  %v1339 = vpop.f32.mrf.mxu0
  %v1340 = vadd.f32 %v1315, %v1339
  %1341 = vdwg.mxu0
  %1342 = vmax.xlane.f32.xlu0 %v1340
  %v1343 = vpop.xlane.xlu0 %1342
  %v1344 = vsub.f32 %v1340, %v1343
  %v1345 = vmul.f32 %v1344, 1.442695
  %v1346 = vpow.pop %v1345
  %1347 = vadd.xlane.f32.xlu0 %v1346
  %v1348 = vpop.xlane.xlu0 %1347
  %v1349 = vrcp.pop %v1348
  %v1350 = vmul.f32 %v1348, %v1349
  %v1351 = vsub.f32 1.0, %v1350
  %v1352 = vmul.f32 %v1349, %v1351
  %v1353 = vadd.f32 %v1349, %v1352
  %vm1354 = vweird.f32 %v1348
  %vm1355 = vweird.f32 %v1349
  %vm1356 = vmor %vm1354, %vm1355
  %v1357 = vsel %vm1356, %v1349, %v1353
  %v1358 = vand.u32 2147483647, %v1348
  %vm1359 = vcmp.eq.f32.partialorder %v1358, 8.507059e+37
  %v1360 = vand.u32 %v1348, 2147483648
  %v1361 = vor.u32 1.1754944e-38, %v1360
  %v1362 = vsel %vm1359, %v1361, %v1357
  %v1363 = vmul.f32 %v1346, %v1362
  %1364 = vst [vmem:[%s9] sm:$0xff] %v1363
  // Predicated region
  $region38: #{context_lstm_forward.1} parent=0 // pred_check
    _
  $region39: #{context_lstm_forward.1} parent=0 // pred_check_branch
    %1366 = sbr.rel (0) target = $region41
  $region40: #{context_lstm_forward.1} parent=0 // pred_region
    _
  $region41: #{context_lstm_forward.1} parent=0 // pred_fallthru
    _
  // Predicated region
  $region42: #{context_lstm_forward.1} parent=0 // pred_check
    _
  $region43: #{context_lstm_forward.1} parent=0 // pred_check_branch
    %1368 = sbr.rel (0) target = $region45
  $region44: #{context_lstm_forward.1} parent=0 // pred_region
    _
  $region45: #{context_lstm_forward.1} parent=0 // pred_fallthru
    _

</llo_original>
